<compile_context>
chip_gen: v7x
topology: tpu7x:2x2x1
jax: 0.10.0
libtpu: 0.0.40
codegen_flags: <defaults>
</compile_context>

<pallas_src>
import random

import numpy as np
import jax
import jax.numpy as jnp
from jax.experimental import pallas as pl
from jax.experimental.pallas import tpu as pltpu

HIDDEN = 32                    # decoder hidden size
VOCAB = 16                     # decoder.output_dim
GATE_W = 4 * HIDDEN            # 128: packed gate width [r_pre | z_pre | gi_n | gh_n]
V_PAD = 128                    # lane-dense padded vocab width for the output tile
TARGET_LEN = 8
TEACHER_FORCING_RATIO = 0.5
NEG_INF = -1e30


def _fused_decode_kernel(tok_ref,    # SMEM (T,)      int32 : input token per step
                         h0_ref,     # VMEM (1, H)    f32   : initial hidden state
                         emb_ref,    # VMEM (V, H)    f32   : embedding table
                         wi_ref,     # VMEM (H, 4H)   f32   : [Wir^T | Wiz^T | Win^T | 0]
                         wh_ref,     # VMEM (H, 4H)   f32   : [Whr^T | Whz^T | 0 | Whn^T]
                         ball_ref,   # VMEM (1, 4H)   f32   : [bir+bhr | biz+bhz | bin | bhn]
                         wout_ref,   # VMEM (H, VP)   f32   : W_out^T zero-padded to 128
                         bout_ref,   # VMEM (1, VP)   f32   : b_out, padded lanes = -1e30
                         logp_ref):  # VMEM (T, VP)   f32   : all log-softmax rows
    H = h0_ref.shape[1]
    T = logp_ref.shape[0]

    # ---- hoisted input path: embedding gather + ReLU for all T tokens ------
    x_rows = [jnp.maximum(emb_ref[pl.ds(tok_ref[t], 1), :], 0.0) for t in range(T)]
    x_all = jnp.concatenate(x_rows, axis=0)                                  # (T, H)

    # One batched MXU push for the input halves of every gate (+ fused biases).
    gi_all = jnp.dot(x_all, wi_ref[...],
                     preferred_element_type=jnp.float32) + ball_ref[...]     # (T, 4H)

    # ---- serial GRU recurrence; hidden state carried purely in vregs -------
    h = h0_ref[...]                                                          # (1, H)
    h_rows = []
    for t in range(T):
        gates = jnp.dot(h, wh_ref[...],
                        preferred_element_type=jnp.float32) + gi_all[t:t + 1, :]  # (1, 4H)
        r = jax.nn.sigmoid(gates[:, 0:H])                  # gi_r + gh_r (pre-summed)
        z = jax.nn.sigmoid(gates[:, H:2 * H])              # gi_z + gh_z (pre-summed)
        n = jnp.tanh(gates[:, 2 * H:3 * H] + r * gates[:, 3 * H:4 * H])
        h = (1.0 - z) * n + z * h                          # PyTorch GRUCell update
        h_rows.append(h)
    h_all = jnp.concatenate(h_rows, axis=0)                                  # (T, H)

    # ---- batched output projection + log-softmax; one (T,128) vreg store ---
    logits = jnp.dot(h_all, wout_ref[...],
                     preferred_element_type=jnp.float32) + bout_ref[...]     # (T, VP)
    m = jnp.max(logits, axis=-1, keepdims=True)
    lse = jnp.log(jnp.sum(jnp.exp(logits - m), axis=-1, keepdims=True)) + m
    logp_ref[...] = logits - lse


def make_fused_decoder(params, target_length):
    emb, wi_pack, wh_pack, b_all, wout_pad, bout_pad = params
    T = target_length

    def vmem():
        return pl.BlockSpec(memory_space=pltpu.MemorySpace.VMEM)

    decode = pl.pallas_call(
        _fused_decode_kernel,
        out_shape=jax.ShapeDtypeStruct((T, V_PAD), jnp.float32),
        in_specs=[
            pl.BlockSpec(memory_space=pltpu.MemorySpace.SMEM),   # tokens (scalars)
            vmem(),   # h0
            vmem(),   # embedding table
            vmem(),   # packed input-gate weight
            vmem(),   # packed hidden-gate weight
            vmem(),   # combined bias
            vmem(),   # output projection (padded)
            vmem(),   # output bias (padded)
        ],
        out_specs=vmem(),
    )

    @jax.jit
    def run(tokens, h0):
        logp_pad = decode(tokens, h0, emb, wi_pack, wh_pack, b_all,
                          wout_pad, bout_pad)
        logp = logp_pad[:, :VOCAB]                               # drop padded lanes on device
        top = jnp.argmax(logp, axis=-1).astype(jnp.int32)        # on-device topk(1)
        return logp, top

    return run


class Seq2Seq:
    """JAX/Pallas port of the reference Seq2Seq forward (decoder unroll)."""

    def __init__(self, decoder_params, output_dim, target_length):
        self.decode = make_fused_decoder(decoder_params, target_length)
        self.output_dim = output_dim
        self.target_length = target_length

    def forward(self, source, target, teacher_forcing_ratio=0.5):
        batch_size = 1
        target_length = target.shape[0]
        vocab_size = self.output_dim
        assert target_length == self.target_length

        dec_hid = jnp.asarray(source, jnp.float32).reshape(1, HIDDEN)
        # dec_inp is never reassigned in the reference -> SOS token 0 every step.
        tokens = jnp.zeros((target_length,), dtype=jnp.int32)

        # ONE fused kernel launch for the whole recurrence, ONE host sync.
        logp_dev, top_dev = self.decode(tokens, dec_hid)
        logp, top = jax.device_get((logp_dev, top_dev))          # (T, V), (T,)

        # Host-side teacher-forcing / EOS bookkeeping (truncation only), exactly
        # mirroring the reference loop; rows after the break stay zero.
        outputs = np.zeros((target_length, batch_size, vocab_size), np.float32)
        for t in range(target_length):
            outputs[t, 0] = logp[t]
            teacher_force = random.random() < teacher_forcing_ratio
            topi = int(top[t])                                   # topk(1) index
            inp = int(target[t, 0]) if teacher_force else topi
            if teacher_force is False and inp == 1:              # EOS break
                break
        return jnp.asarray(outputs)


def init_decoder_params(key, hidden, vocab):
    ks = jax.random.split(key, 7)
    s = 1.0 / np.sqrt(hidden)
    emb = 0.1 * jax.random.normal(ks[0], (vocab, hidden), jnp.float32)
    wih = jax.random.uniform(ks[1], (3 * hidden, hidden), jnp.float32, -s, s)
    whh = jax.random.uniform(ks[2], (3 * hidden, hidden), jnp.float32, -s, s)
    bih = jax.random.uniform(ks[3], (3 * hidden,), jnp.float32, -s, s)
    bhh = jax.random.uniform(ks[4], (3 * hidden,), jnp.float32, -s, s)
    wout = jax.random.uniform(ks[5], (vocab, hidden), jnp.float32, -s, s)
    bout = jax.random.uniform(ks[6], (vocab,), jnp.float32, -s, s)

    # ---- repack into the fused-kernel layout (done once, at init) ----------
    H = hidden
    wir, wiz, win = wih[0:H], wih[H:2 * H], wih[2 * H:3 * H]
    whr, whz, whn = whh[0:H], whh[H:2 * H], whh[2 * H:3 * H]
    bir, biz, bin_ = bih[0:H], bih[H:2 * H], bih[2 * H:3 * H]
    bhr, bhz, bhn = bhh[0:H], bhh[H:2 * H], bhh[2 * H:3 * H]
    zeros = jnp.zeros((H, H), jnp.float32)

    # Lane-dense 4H = 128 gate layout: [r_pre | z_pre | gi_n | gh_n].
    wi_pack = jnp.concatenate([wir.T, wiz.T, win.T, zeros], axis=1)          # (H, 4H)
    wh_pack = jnp.concatenate([whr.T, whz.T, zeros, whn.T], axis=1)          # (H, 4H)
    b_all = jnp.concatenate([bir + bhr, biz + bhz, bin_, bhn]).reshape(1, 4 * H)

    # Lane-dense output projection: zero-pad weights to 128 lanes; padded bias
    # lanes get -1e30 so the 128-wide log-softmax matches the V-wide one.
    wout_pad = jnp.zeros((H, V_PAD), jnp.float32).at[:, :vocab].set(wout.T)
    bout_pad = jnp.full((1, V_PAD), NEG_INF, jnp.float32).at[0, :vocab].set(bout)

    return (emb, wi_pack, wh_pack, b_all, wout_pad, bout_pad)


if __name__ == "__main__":
    random.seed(0)  # deterministic teacher-forcing coin flips

    root = jax.random.PRNGKey(0)
    k_params, k_src, k_tgt = jax.random.split(root, 3)

    params = init_decoder_params(k_params, HIDDEN, VOCAB)
    model = Seq2Seq(params, output_dim=VOCAB, target_length=TARGET_LEN)

    # source plays the role of the encoder's final hidden state (1, 1, H);
    # target is a (T, 1) sequence of token ids.
    source = jax.random.normal(k_src, (1, 1, HIDDEN), jnp.float32)
    target = np.asarray(
        jax.random.randint(k_tgt, (TARGET_LEN, 1), 0, VOCAB, jnp.int32))

    outputs = model.forward(source, target, TEACHER_FORCING_RATIO)
    jax.block_until_ready(outputs)
    assert outputs.shape == (TARGET_LEN, 1, VOCAB)
    print("KERNEL_OK")
</pallas_src>

<mosaic_0001>
module attributes {stable_mosaic.version = 11 : i64} {
  func.func @_fused_decode_kernel(%arg0: memref<8xi32, #tpu.memory_space<smem>>, %arg1: memref<1x32xf32, #tpu.memory_space<vmem>>, %arg2: memref<16x32xf32, #tpu.memory_space<vmem>>, %arg3: memref<32x128xf32, #tpu.memory_space<vmem>>, %arg4: memref<32x128xf32, #tpu.memory_space<vmem>>, %arg5: memref<1x128xf32, #tpu.memory_space<vmem>>, %arg6: memref<32x128xf32, #tpu.memory_space<vmem>>, %arg7: memref<1x128xf32, #tpu.memory_space<vmem>>, %arg8: memref<8x128xf32, #tpu.memory_space<vmem>>) attributes {dimension_semantics = [], scalar_prefetch = 0 : i64, scratch_operands = 0 : i64, tpu.core_type = #tpu.core_type<tc>} {
    %c0 = arith.constant 0 : index
    %0 = memref.load %arg0[%c0] : memref<8xi32, #tpu.memory_space<smem>>
    %1 = arith.index_cast %0 : i32 to index
    %c0_0 = arith.constant 0 : index
    %2 = vector.load %arg2[%1, %c0_0] : memref<16x32xf32, #tpu.memory_space<vmem>>, vector<1x32xf32>
    %cst = arith.constant 0.000000e+00 : f32
    %3 = vector.broadcast %cst : f32 to vector<1x32xf32>
    %4 = arith.maximumf %2, %3 : vector<1x32xf32>
    %c1 = arith.constant 1 : index
    %5 = memref.load %arg0[%c1] : memref<8xi32, #tpu.memory_space<smem>>
    %6 = arith.index_cast %5 : i32 to index
    %c0_1 = arith.constant 0 : index
    %7 = vector.load %arg2[%6, %c0_1] : memref<16x32xf32, #tpu.memory_space<vmem>>, vector<1x32xf32>
    %cst_2 = arith.constant 0.000000e+00 : f32
    %8 = vector.broadcast %cst_2 : f32 to vector<1x32xf32>
    %9 = arith.maximumf %7, %8 : vector<1x32xf32>
    %c2 = arith.constant 2 : index
    %10 = memref.load %arg0[%c2] : memref<8xi32, #tpu.memory_space<smem>>
    %11 = arith.index_cast %10 : i32 to index
    %c0_3 = arith.constant 0 : index
    %12 = vector.load %arg2[%11, %c0_3] : memref<16x32xf32, #tpu.memory_space<vmem>>, vector<1x32xf32>
    %cst_4 = arith.constant 0.000000e+00 : f32
    %13 = vector.broadcast %cst_4 : f32 to vector<1x32xf32>
    %14 = arith.maximumf %12, %13 : vector<1x32xf32>
    %c3 = arith.constant 3 : index
    %15 = memref.load %arg0[%c3] : memref<8xi32, #tpu.memory_space<smem>>
    %16 = arith.index_cast %15 : i32 to index
    %c0_5 = arith.constant 0 : index
    %17 = vector.load %arg2[%16, %c0_5] : memref<16x32xf32, #tpu.memory_space<vmem>>, vector<1x32xf32>
    %cst_6 = arith.constant 0.000000e+00 : f32
    %18 = vector.broadcast %cst_6 : f32 to vector<1x32xf32>
    %19 = arith.maximumf %17, %18 : vector<1x32xf32>
    %c4 = arith.constant 4 : index
    %20 = memref.load %arg0[%c4] : memref<8xi32, #tpu.memory_space<smem>>
    %21 = arith.index_cast %20 : i32 to index
    %c0_7 = arith.constant 0 : index
    %22 = vector.load %arg2[%21, %c0_7] : memref<16x32xf32, #tpu.memory_space<vmem>>, vector<1x32xf32>
    %cst_8 = arith.constant 0.000000e+00 : f32
    %23 = vector.broadcast %cst_8 : f32 to vector<1x32xf32>
    %24 = arith.maximumf %22, %23 : vector<1x32xf32>
    %c5 = arith.constant 5 : index
    %25 = memref.load %arg0[%c5] : memref<8xi32, #tpu.memory_space<smem>>
    %26 = arith.index_cast %25 : i32 to index
    %c0_9 = arith.constant 0 : index
    %27 = vector.load %arg2[%26, %c0_9] : memref<16x32xf32, #tpu.memory_space<vmem>>, vector<1x32xf32>
    %cst_10 = arith.constant 0.000000e+00 : f32
    %28 = vector.broadcast %cst_10 : f32 to vector<1x32xf32>
    %29 = arith.maximumf %27, %28 : vector<1x32xf32>
    %c6 = arith.constant 6 : index
    %30 = memref.load %arg0[%c6] : memref<8xi32, #tpu.memory_space<smem>>
    %31 = arith.index_cast %30 : i32 to index
    %c0_11 = arith.constant 0 : index
    %32 = vector.load %arg2[%31, %c0_11] : memref<16x32xf32, #tpu.memory_space<vmem>>, vector<1x32xf32>
    %cst_12 = arith.constant 0.000000e+00 : f32
    %33 = vector.broadcast %cst_12 : f32 to vector<1x32xf32>
    %34 = arith.maximumf %32, %33 : vector<1x32xf32>
    %c7 = arith.constant 7 : index
    %35 = memref.load %arg0[%c7] : memref<8xi32, #tpu.memory_space<smem>>
    %36 = arith.index_cast %35 : i32 to index
    %c0_13 = arith.constant 0 : index
    %37 = vector.load %arg2[%36, %c0_13] : memref<16x32xf32, #tpu.memory_space<vmem>>, vector<1x32xf32>
    %cst_14 = arith.constant 0.000000e+00 : f32
    %38 = vector.broadcast %cst_14 : f32 to vector<1x32xf32>
    %39 = arith.maximumf %37, %38 : vector<1x32xf32>
    %40 = tpu.concatenate %4, %9, %14, %19, %24, %29, %34, %39 in 0 : vector<1x32xf32>, vector<1x32xf32>, vector<1x32xf32>, vector<1x32xf32>, vector<1x32xf32>, vector<1x32xf32>, vector<1x32xf32>, vector<1x32xf32> -> vector<8x32xf32>
    %c0_15 = arith.constant 0 : index
    %c0_16 = arith.constant 0 : index
    %41 = vector.load %arg3[%c0_15, %c0_16] : memref<32x128xf32, #tpu.memory_space<vmem>>, vector<32x128xf32>
    %cst_17 = arith.constant dense<0.000000e+00> : vector<8x128xf32>
    %42 = tpu.matmul %40, %41, %cst_17 {dimension_numbers = #tpu.dot_dimension_numbers<[1], [0], [0], [1], [0, 0, 1, 1], [], []>} : vector<8x32xf32>, vector<32x128xf32>, vector<8x128xf32> -> vector<8x128xf32>
    %c0_18 = arith.constant 0 : index
    %c0_19 = arith.constant 0 : index
    %43 = vector.load %arg5[%c0_18, %c0_19] : memref<1x128xf32, #tpu.memory_space<vmem>>, vector<1x128xf32>
    %44 = vector.broadcast %43 : vector<1x128xf32> to vector<8x128xf32>
    %45 = arith.addf %42, %44 : vector<8x128xf32>
    %c0_20 = arith.constant 0 : index
    %c0_21 = arith.constant 0 : index
    %46 = vector.load %arg1[%c0_20, %c0_21] : memref<1x32xf32, #tpu.memory_space<vmem>>, vector<1x32xf32>
    %c0_22 = arith.constant 0 : index
    %c0_23 = arith.constant 0 : index
    %47 = vector.load %arg4[%c0_22, %c0_23] : memref<32x128xf32, #tpu.memory_space<vmem>>, vector<32x128xf32>
    %cst_24 = arith.constant dense<0.000000e+00> : vector<1x128xf32>
    %48 = tpu.matmul %46, %47, %cst_24 {dimension_numbers = #tpu.dot_dimension_numbers<[1], [0], [0], [1], [0, 0, 1, 1], [], []>} : vector<1x32xf32>, vector<32x128xf32>, vector<1x128xf32> -> vector<1x128xf32>
    %49 = vector.extract_strided_slice %45 {offsets = [0, 0], sizes = [1, 128], strides = [1, 1]} : vector<8x128xf32> to vector<1x128xf32>
    %50 = arith.addf %48, %49 : vector<1x128xf32>
    %51 = vector.extract_strided_slice %50 {offsets = [0, 0], sizes = [1, 32], strides = [1, 1]} : vector<1x128xf32> to vector<1x32xf32>
    %52 = arith.negf %51 : vector<1x32xf32>
    %53 = math.exp %52 : vector<1x32xf32>
    %cst_25 = arith.constant 1.000000e+00 : f32
    %54 = vector.broadcast %cst_25 : f32 to vector<1x32xf32>
    %55 = arith.addf %54, %53 : vector<1x32xf32>
    %56 = arith.divf %54, %55 : vector<1x32xf32>
    %57 = vector.extract_strided_slice %50 {offsets = [0, 32], sizes = [1, 32], strides = [1, 1]} : vector<1x128xf32> to vector<1x32xf32>
    %58 = arith.negf %57 : vector<1x32xf32>
    %59 = math.exp %58 : vector<1x32xf32>
    %cst_26 = arith.constant 1.000000e+00 : f32
    %60 = vector.broadcast %cst_26 : f32 to vector<1x32xf32>
    %61 = arith.addf %60, %59 : vector<1x32xf32>
    %62 = arith.divf %60, %61 : vector<1x32xf32>
    %63 = vector.extract_strided_slice %50 {offsets = [0, 64], sizes = [1, 32], strides = [1, 1]} : vector<1x128xf32> to vector<1x32xf32>
    %64 = vector.extract_strided_slice %50 {offsets = [0, 96], sizes = [1, 32], strides = [1, 1]} : vector<1x128xf32> to vector<1x32xf32>
    %65 = arith.mulf %56, %64 : vector<1x32xf32>
    %66 = arith.addf %63, %65 : vector<1x32xf32>
    %67 = math.tanh %66 : vector<1x32xf32>
    %cst_27 = arith.constant 1.000000e+00 : f32
    %68 = vector.broadcast %cst_27 : f32 to vector<1x32xf32>
    %69 = arith.subf %68, %62 : vector<1x32xf32>
    %70 = arith.mulf %69, %67 : vector<1x32xf32>
    %71 = arith.mulf %62, %46 : vector<1x32xf32>
    %72 = arith.addf %70, %71 : vector<1x32xf32>
    %c0_28 = arith.constant 0 : index
    %c0_29 = arith.constant 0 : index
    %73 = vector.load %arg4[%c0_28, %c0_29] : memref<32x128xf32, #tpu.memory_space<vmem>>, vector<32x128xf32>
    %cst_30 = arith.constant dense<0.000000e+00> : vector<1x128xf32>
    %74 = tpu.matmul %72, %73, %cst_30 {dimension_numbers = #tpu.dot_dimension_numbers<[1], [0], [0], [1], [0, 0, 1, 1], [], []>} : vector<1x32xf32>, vector<32x128xf32>, vector<1x128xf32> -> vector<1x128xf32>
    %75 = vector.extract_strided_slice %45 {offsets = [1, 0], sizes = [1, 128], strides = [1, 1]} : vector<8x128xf32> to vector<1x128xf32>
    %76 = arith.addf %74, %75 : vector<1x128xf32>
    %77 = vector.extract_strided_slice %76 {offsets = [0, 0], sizes = [1, 32], strides = [1, 1]} : vector<1x128xf32> to vector<1x32xf32>
    %78 = arith.negf %77 : vector<1x32xf32>
    %79 = math.exp %78 : vector<1x32xf32>
    %cst_31 = arith.constant 1.000000e+00 : f32
    %80 = vector.broadcast %cst_31 : f32 to vector<1x32xf32>
    %81 = arith.addf %80, %79 : vector<1x32xf32>
    %82 = arith.divf %80, %81 : vector<1x32xf32>
    %83 = vector.extract_strided_slice %76 {offsets = [0, 32], sizes = [1, 32], strides = [1, 1]} : vector<1x128xf32> to vector<1x32xf32>
    %84 = arith.negf %83 : vector<1x32xf32>
    %85 = math.exp %84 : vector<1x32xf32>
    %cst_32 = arith.constant 1.000000e+00 : f32
    %86 = vector.broadcast %cst_32 : f32 to vector<1x32xf32>
    %87 = arith.addf %86, %85 : vector<1x32xf32>
    %88 = arith.divf %86, %87 : vector<1x32xf32>
    %89 = vector.extract_strided_slice %76 {offsets = [0, 64], sizes = [1, 32], strides = [1, 1]} : vector<1x128xf32> to vector<1x32xf32>
    %90 = vector.extract_strided_slice %76 {offsets = [0, 96], sizes = [1, 32], strides = [1, 1]} : vector<1x128xf32> to vector<1x32xf32>
    %91 = arith.mulf %82, %90 : vector<1x32xf32>
    %92 = arith.addf %89, %91 : vector<1x32xf32>
    %93 = math.tanh %92 : vector<1x32xf32>
    %cst_33 = arith.constant 1.000000e+00 : f32
    %94 = vector.broadcast %cst_33 : f32 to vector<1x32xf32>
    %95 = arith.subf %94, %88 : vector<1x32xf32>
    %96 = arith.mulf %95, %93 : vector<1x32xf32>
    %97 = arith.mulf %88, %72 : vector<1x32xf32>
    %98 = arith.addf %96, %97 : vector<1x32xf32>
    %c0_34 = arith.constant 0 : index
    %c0_35 = arith.constant 0 : index
    %99 = vector.load %arg4[%c0_34, %c0_35] : memref<32x128xf32, #tpu.memory_space<vmem>>, vector<32x128xf32>
    %cst_36 = arith.constant dense<0.000000e+00> : vector<1x128xf32>
    %100 = tpu.matmul %98, %99, %cst_36 {dimension_numbers = #tpu.dot_dimension_numbers<[1], [0], [0], [1], [0, 0, 1, 1], [], []>} : vector<1x32xf32>, vector<32x128xf32>, vector<1x128xf32> -> vector<1x128xf32>
    %101 = vector.extract_strided_slice %45 {offsets = [2, 0], sizes = [1, 128], strides = [1, 1]} : vector<8x128xf32> to vector<1x128xf32>
    %102 = arith.addf %100, %101 : vector<1x128xf32>
    %103 = vector.extract_strided_slice %102 {offsets = [0, 0], sizes = [1, 32], strides = [1, 1]} : vector<1x128xf32> to vector<1x32xf32>
    %104 = arith.negf %103 : vector<1x32xf32>
    %105 = math.exp %104 : vector<1x32xf32>
    %cst_37 = arith.constant 1.000000e+00 : f32
    %106 = vector.broadcast %cst_37 : f32 to vector<1x32xf32>
    %107 = arith.addf %106, %105 : vector<1x32xf32>
    %108 = arith.divf %106, %107 : vector<1x32xf32>
    %109 = vector.extract_strided_slice %102 {offsets = [0, 32], sizes = [1, 32], strides = [1, 1]} : vector<1x128xf32> to vector<1x32xf32>
    %110 = arith.negf %109 : vector<1x32xf32>
    %111 = math.exp %110 : vector<1x32xf32>
    %cst_38 = arith.constant 1.000000e+00 : f32
    %112 = vector.broadcast %cst_38 : f32 to vector<1x32xf32>
    %113 = arith.addf %112, %111 : vector<1x32xf32>
    %114 = arith.divf %112, %113 : vector<1x32xf32>
    %115 = vector.extract_strided_slice %102 {offsets = [0, 64], sizes = [1, 32], strides = [1, 1]} : vector<1x128xf32> to vector<1x32xf32>
    %116 = vector.extract_strided_slice %102 {offsets = [0, 96], sizes = [1, 32], strides = [1, 1]} : vector<1x128xf32> to vector<1x32xf32>
    %117 = arith.mulf %108, %116 : vector<1x32xf32>
    %118 = arith.addf %115, %117 : vector<1x32xf32>
    %119 = math.tanh %118 : vector<1x32xf32>
    %cst_39 = arith.constant 1.000000e+00 : f32
    %120 = vector.broadcast %cst_39 : f32 to vector<1x32xf32>
    %121 = arith.subf %120, %114 : vector<1x32xf32>
    %122 = arith.mulf %121, %119 : vector<1x32xf32>
    %123 = arith.mulf %114, %98 : vector<1x32xf32>
    %124 = arith.addf %122, %123 : vector<1x32xf32>
    %c0_40 = arith.constant 0 : index
    %c0_41 = arith.constant 0 : index
    %125 = vector.load %arg4[%c0_40, %c0_41] : memref<32x128xf32, #tpu.memory_space<vmem>>, vector<32x128xf32>
    %cst_42 = arith.constant dense<0.000000e+00> : vector<1x128xf32>
    %126 = tpu.matmul %124, %125, %cst_42 {dimension_numbers = #tpu.dot_dimension_numbers<[1], [0], [0], [1], [0, 0, 1, 1], [], []>} : vector<1x32xf32>, vector<32x128xf32>, vector<1x128xf32> -> vector<1x128xf32>
    %127 = vector.extract_strided_slice %45 {offsets = [3, 0], sizes = [1, 128], strides = [1, 1]} : vector<8x128xf32> to vector<1x128xf32>
    %128 = arith.addf %126, %127 : vector<1x128xf32>
    %129 = vector.extract_strided_slice %128 {offsets = [0, 0], sizes = [1, 32], strides = [1, 1]} : vector<1x128xf32> to vector<1x32xf32>
    %130 = arith.negf %129 : vector<1x32xf32>
    %131 = math.exp %130 : vector<1x32xf32>
    %cst_43 = arith.constant 1.000000e+00 : f32
    %132 = vector.broadcast %cst_43 : f32 to vector<1x32xf32>
    %133 = arith.addf %132, %131 : vector<1x32xf32>
    %134 = arith.divf %132, %133 : vector<1x32xf32>
    %135 = vector.extract_strided_slice %128 {offsets = [0, 32], sizes = [1, 32], strides = [1, 1]} : vector<1x128xf32> to vector<1x32xf32>
    %136 = arith.negf %135 : vector<1x32xf32>
    %137 = math.exp %136 : vector<1x32xf32>
    %cst_44 = arith.constant 1.000000e+00 : f32
    %138 = vector.broadcast %cst_44 : f32 to vector<1x32xf32>
    %139 = arith.addf %138, %137 : vector<1x32xf32>
    %140 = arith.divf %138, %139 : vector<1x32xf32>
    %141 = vector.extract_strided_slice %128 {offsets = [0, 64], sizes = [1, 32], strides = [1, 1]} : vector<1x128xf32> to vector<1x32xf32>
    %142 = vector.extract_strided_slice %128 {offsets = [0, 96], sizes = [1, 32], strides = [1, 1]} : vector<1x128xf32> to vector<1x32xf32>
    %143 = arith.mulf %134, %142 : vector<1x32xf32>
    %144 = arith.addf %141, %143 : vector<1x32xf32>
    %145 = math.tanh %144 : vector<1x32xf32>
    %cst_45 = arith.constant 1.000000e+00 : f32
    %146 = vector.broadcast %cst_45 : f32 to vector<1x32xf32>
    %147 = arith.subf %146, %140 : vector<1x32xf32>
    %148 = arith.mulf %147, %145 : vector<1x32xf32>
    %149 = arith.mulf %140, %124 : vector<1x32xf32>
    %150 = arith.addf %148, %149 : vector<1x32xf32>
    %c0_46 = arith.constant 0 : index
    %c0_47 = arith.constant 0 : index
    %151 = vector.load %arg4[%c0_46, %c0_47] : memref<32x128xf32, #tpu.memory_space<vmem>>, vector<32x128xf32>
    %cst_48 = arith.constant dense<0.000000e+00> : vector<1x128xf32>
    %152 = tpu.matmul %150, %151, %cst_48 {dimension_numbers = #tpu.dot_dimension_numbers<[1], [0], [0], [1], [0, 0, 1, 1], [], []>} : vector<1x32xf32>, vector<32x128xf32>, vector<1x128xf32> -> vector<1x128xf32>
    %153 = vector.extract_strided_slice %45 {offsets = [4, 0], sizes = [1, 128], strides = [1, 1]} : vector<8x128xf32> to vector<1x128xf32>
    %154 = arith.addf %152, %153 : vector<1x128xf32>
    %155 = vector.extract_strided_slice %154 {offsets = [0, 0], sizes = [1, 32], strides = [1, 1]} : vector<1x128xf32> to vector<1x32xf32>
    %156 = arith.negf %155 : vector<1x32xf32>
    %157 = math.exp %156 : vector<1x32xf32>
    %cst_49 = arith.constant 1.000000e+00 : f32
    %158 = vector.broadcast %cst_49 : f32 to vector<1x32xf32>
    %159 = arith.addf %158, %157 : vector<1x32xf32>
    %160 = arith.divf %158, %159 : vector<1x32xf32>
    %161 = vector.extract_strided_slice %154 {offsets = [0, 32], sizes = [1, 32], strides = [1, 1]} : vector<1x128xf32> to vector<1x32xf32>
    %162 = arith.negf %161 : vector<1x32xf32>
    %163 = math.exp %162 : vector<1x32xf32>
    %cst_50 = arith.constant 1.000000e+00 : f32
    %164 = vector.broadcast %cst_50 : f32 to vector<1x32xf32>
    %165 = arith.addf %164, %163 : vector<1x32xf32>
    %166 = arith.divf %164, %165 : vector<1x32xf32>
    %167 = vector.extract_strided_slice %154 {offsets = [0, 64], sizes = [1, 32], strides = [1, 1]} : vector<1x128xf32> to vector<1x32xf32>
    %168 = vector.extract_strided_slice %154 {offsets = [0, 96], sizes = [1, 32], strides = [1, 1]} : vector<1x128xf32> to vector<1x32xf32>
    %169 = arith.mulf %160, %168 : vector<1x32xf32>
    %170 = arith.addf %167, %169 : vector<1x32xf32>
    %171 = math.tanh %170 : vector<1x32xf32>
    %cst_51 = arith.constant 1.000000e+00 : f32
    %172 = vector.broadcast %cst_51 : f32 to vector<1x32xf32>
    %173 = arith.subf %172, %166 : vector<1x32xf32>
    %174 = arith.mulf %173, %171 : vector<1x32xf32>
    %175 = arith.mulf %166, %150 : vector<1x32xf32>
    %176 = arith.addf %174, %175 : vector<1x32xf32>
    %c0_52 = arith.constant 0 : index
    %c0_53 = arith.constant 0 : index
    %177 = vector.load %arg4[%c0_52, %c0_53] : memref<32x128xf32, #tpu.memory_space<vmem>>, vector<32x128xf32>
    %cst_54 = arith.constant dense<0.000000e+00> : vector<1x128xf32>
    %178 = tpu.matmul %176, %177, %cst_54 {dimension_numbers = #tpu.dot_dimension_numbers<[1], [0], [0], [1], [0, 0, 1, 1], [], []>} : vector<1x32xf32>, vector<32x128xf32>, vector<1x128xf32> -> vector<1x128xf32>
    %179 = vector.extract_strided_slice %45 {offsets = [5, 0], sizes = [1, 128], strides = [1, 1]} : vector<8x128xf32> to vector<1x128xf32>
    %180 = arith.addf %178, %179 : vector<1x128xf32>
    %181 = vector.extract_strided_slice %180 {offsets = [0, 0], sizes = [1, 32], strides = [1, 1]} : vector<1x128xf32> to vector<1x32xf32>
    %182 = arith.negf %181 : vector<1x32xf32>
    %183 = math.exp %182 : vector<1x32xf32>
    %cst_55 = arith.constant 1.000000e+00 : f32
    %184 = vector.broadcast %cst_55 : f32 to vector<1x32xf32>
    %185 = arith.addf %184, %183 : vector<1x32xf32>
    %186 = arith.divf %184, %185 : vector<1x32xf32>
    %187 = vector.extract_strided_slice %180 {offsets = [0, 32], sizes = [1, 32], strides = [1, 1]} : vector<1x128xf32> to vector<1x32xf32>
    %188 = arith.negf %187 : vector<1x32xf32>
    %189 = math.exp %188 : vector<1x32xf32>
    %cst_56 = arith.constant 1.000000e+00 : f32
    %190 = vector.broadcast %cst_56 : f32 to vector<1x32xf32>
    %191 = arith.addf %190, %189 : vector<1x32xf32>
    %192 = arith.divf %190, %191 : vector<1x32xf32>
    %193 = vector.extract_strided_slice %180 {offsets = [0, 64], sizes = [1, 32], strides = [1, 1]} : vector<1x128xf32> to vector<1x32xf32>
    %194 = vector.extract_strided_slice %180 {offsets = [0, 96], sizes = [1, 32], strides = [1, 1]} : vector<1x128xf32> to vector<1x32xf32>
    %195 = arith.mulf %186, %194 : vector<1x32xf32>
    %196 = arith.addf %193, %195 : vector<1x32xf32>
    %197 = math.tanh %196 : vector<1x32xf32>
    %cst_57 = arith.constant 1.000000e+00 : f32
    %198 = vector.broadcast %cst_57 : f32 to vector<1x32xf32>
    %199 = arith.subf %198, %192 : vector<1x32xf32>
    %200 = arith.mulf %199, %197 : vector<1x32xf32>
    %201 = arith.mulf %192, %176 : vector<1x32xf32>
    %202 = arith.addf %200, %201 : vector<1x32xf32>
    %c0_58 = arith.constant 0 : index
    %c0_59 = arith.constant 0 : index
    %203 = vector.load %arg4[%c0_58, %c0_59] : memref<32x128xf32, #tpu.memory_space<vmem>>, vector<32x128xf32>
    %cst_60 = arith.constant dense<0.000000e+00> : vector<1x128xf32>
    %204 = tpu.matmul %202, %203, %cst_60 {dimension_numbers = #tpu.dot_dimension_numbers<[1], [0], [0], [1], [0, 0, 1, 1], [], []>} : vector<1x32xf32>, vector<32x128xf32>, vector<1x128xf32> -> vector<1x128xf32>
    %205 = vector.extract_strided_slice %45 {offsets = [6, 0], sizes = [1, 128], strides = [1, 1]} : vector<8x128xf32> to vector<1x128xf32>
    %206 = arith.addf %204, %205 : vector<1x128xf32>
    %207 = vector.extract_strided_slice %206 {offsets = [0, 0], sizes = [1, 32], strides = [1, 1]} : vector<1x128xf32> to vector<1x32xf32>
    %208 = arith.negf %207 : vector<1x32xf32>
    %209 = math.exp %208 : vector<1x32xf32>
    %cst_61 = arith.constant 1.000000e+00 : f32
    %210 = vector.broadcast %cst_61 : f32 to vector<1x32xf32>
    %211 = arith.addf %210, %209 : vector<1x32xf32>
    %212 = arith.divf %210, %211 : vector<1x32xf32>
    %213 = vector.extract_strided_slice %206 {offsets = [0, 32], sizes = [1, 32], strides = [1, 1]} : vector<1x128xf32> to vector<1x32xf32>
    %214 = arith.negf %213 : vector<1x32xf32>
    %215 = math.exp %214 : vector<1x32xf32>
    %cst_62 = arith.constant 1.000000e+00 : f32
    %216 = vector.broadcast %cst_62 : f32 to vector<1x32xf32>
    %217 = arith.addf %216, %215 : vector<1x32xf32>
    %218 = arith.divf %216, %217 : vector<1x32xf32>
    %219 = vector.extract_strided_slice %206 {offsets = [0, 64], sizes = [1, 32], strides = [1, 1]} : vector<1x128xf32> to vector<1x32xf32>
    %220 = vector.extract_strided_slice %206 {offsets = [0, 96], sizes = [1, 32], strides = [1, 1]} : vector<1x128xf32> to vector<1x32xf32>
    %221 = arith.mulf %212, %220 : vector<1x32xf32>
    %222 = arith.addf %219, %221 : vector<1x32xf32>
    %223 = math.tanh %222 : vector<1x32xf32>
    %cst_63 = arith.constant 1.000000e+00 : f32
    %224 = vector.broadcast %cst_63 : f32 to vector<1x32xf32>
    %225 = arith.subf %224, %218 : vector<1x32xf32>
    %226 = arith.mulf %225, %223 : vector<1x32xf32>
    %227 = arith.mulf %218, %202 : vector<1x32xf32>
    %228 = arith.addf %226, %227 : vector<1x32xf32>
    %c0_64 = arith.constant 0 : index
    %c0_65 = arith.constant 0 : index
    %229 = vector.load %arg4[%c0_64, %c0_65] : memref<32x128xf32, #tpu.memory_space<vmem>>, vector<32x128xf32>
    %cst_66 = arith.constant dense<0.000000e+00> : vector<1x128xf32>
    %230 = tpu.matmul %228, %229, %cst_66 {dimension_numbers = #tpu.dot_dimension_numbers<[1], [0], [0], [1], [0, 0, 1, 1], [], []>} : vector<1x32xf32>, vector<32x128xf32>, vector<1x128xf32> -> vector<1x128xf32>
    %231 = vector.extract_strided_slice %45 {offsets = [7, 0], sizes = [1, 128], strides = [1, 1]} : vector<8x128xf32> to vector<1x128xf32>
    %232 = arith.addf %230, %231 : vector<1x128xf32>
    %233 = vector.extract_strided_slice %232 {offsets = [0, 0], sizes = [1, 32], strides = [1, 1]} : vector<1x128xf32> to vector<1x32xf32>
    %234 = arith.negf %233 : vector<1x32xf32>
    %235 = math.exp %234 : vector<1x32xf32>
    %cst_67 = arith.constant 1.000000e+00 : f32
    %236 = vector.broadcast %cst_67 : f32 to vector<1x32xf32>
    %237 = arith.addf %236, %235 : vector<1x32xf32>
    %238 = arith.divf %236, %237 : vector<1x32xf32>
    %239 = vector.extract_strided_slice %232 {offsets = [0, 32], sizes = [1, 32], strides = [1, 1]} : vector<1x128xf32> to vector<1x32xf32>
    %240 = arith.negf %239 : vector<1x32xf32>
    %241 = math.exp %240 : vector<1x32xf32>
    %cst_68 = arith.constant 1.000000e+00 : f32
    %242 = vector.broadcast %cst_68 : f32 to vector<1x32xf32>
    %243 = arith.addf %242, %241 : vector<1x32xf32>
    %244 = arith.divf %242, %243 : vector<1x32xf32>
    %245 = vector.extract_strided_slice %232 {offsets = [0, 64], sizes = [1, 32], strides = [1, 1]} : vector<1x128xf32> to vector<1x32xf32>
    %246 = vector.extract_strided_slice %232 {offsets = [0, 96], sizes = [1, 32], strides = [1, 1]} : vector<1x128xf32> to vector<1x32xf32>
    %247 = arith.mulf %238, %246 : vector<1x32xf32>
    %248 = arith.addf %245, %247 : vector<1x32xf32>
    %249 = math.tanh %248 : vector<1x32xf32>
    %cst_69 = arith.constant 1.000000e+00 : f32
    %250 = vector.broadcast %cst_69 : f32 to vector<1x32xf32>
    %251 = arith.subf %250, %244 : vector<1x32xf32>
    %252 = arith.mulf %251, %249 : vector<1x32xf32>
    %253 = arith.mulf %244, %228 : vector<1x32xf32>
    %254 = arith.addf %252, %253 : vector<1x32xf32>
    %255 = tpu.concatenate %72, %98, %124, %150, %176, %202, %228, %254 in 0 : vector<1x32xf32>, vector<1x32xf32>, vector<1x32xf32>, vector<1x32xf32>, vector<1x32xf32>, vector<1x32xf32>, vector<1x32xf32>, vector<1x32xf32> -> vector<8x32xf32>
    %c0_70 = arith.constant 0 : index
    %c0_71 = arith.constant 0 : index
    %256 = vector.load %arg6[%c0_70, %c0_71] : memref<32x128xf32, #tpu.memory_space<vmem>>, vector<32x128xf32>
    %cst_72 = arith.constant dense<0.000000e+00> : vector<8x128xf32>
    %257 = tpu.matmul %255, %256, %cst_72 {dimension_numbers = #tpu.dot_dimension_numbers<[1], [0], [0], [1], [0, 0, 1, 1], [], []>} : vector<8x32xf32>, vector<32x128xf32>, vector<8x128xf32> -> vector<8x128xf32>
    %c0_73 = arith.constant 0 : index
    %c0_74 = arith.constant 0 : index
    %258 = vector.load %arg7[%c0_73, %c0_74] : memref<1x128xf32, #tpu.memory_space<vmem>>, vector<1x128xf32>
    %259 = vector.broadcast %258 : vector<1x128xf32> to vector<8x128xf32>
    %260 = arith.addf %257, %259 : vector<8x128xf32>
    %cst_75 = arith.constant dense<0xFF800000> : vector<8xf32>
    %261 = vector.multi_reduction <maximumf>, %260, %cst_75 [1] : vector<8x128xf32> to vector<8xf32>
    %262 = vector.shape_cast %261 : vector<8xf32> to vector<8x1xf32>
    %263 = vector.broadcast %262 : vector<8x1xf32> to vector<8x128xf32>
    %264 = arith.subf %260, %263 : vector<8x128xf32>
    %265 = math.exp %264 : vector<8x128xf32>
    %cst_76 = arith.constant dense<0.000000e+00> : vector<8xf32>
    %266 = vector.multi_reduction <add>, %265, %cst_76 [1] : vector<8x128xf32> to vector<8xf32>
    %267 = vector.shape_cast %266 : vector<8xf32> to vector<8x1xf32>
    %268 = math.log %267 : vector<8x1xf32>
    %269 = arith.addf %268, %262 : vector<8x1xf32>
    %270 = vector.broadcast %269 : vector<8x1xf32> to vector<8x128xf32>
    %271 = arith.subf %260, %270 : vector<8x128xf32>
    %c0_77 = arith.constant 0 : index
    %c0_78 = arith.constant 0 : index
    %272 = vector.load %arg8[%c0_77, %c0_78] : memref<8x128xf32, #tpu.memory_space<vmem>>, vector<8x128xf32>
    tpu.vector_store %arg8[%c0_77, %c0_78], %271 {strides = array<i32>} : memref<8x128xf32, #tpu.memory_space<vmem>>, vector<8x128xf32>,
    return
  }
}

</mosaic_0001>

<llo_original>
// kernel: run.1
$region0: #{run.1}
  #allocation0 [shape = 'u32[]', space=smem, size = 0x4, offset = 0x4, fixed_abs, tag = 'smem constant byte address 0x4 - core index']
  #allocation1 [shape = 'u32[144,128]{1,0:T(1,128)}', space=vmem, size = 0x12000, scoped, tag = 'internal scratch']
  %s0 = inlined_call_operand.hbm [shape: s32[8], index: 0, kind: input, shape index: {}]
  %s1 = inlined_call_operand.vmem [shape: f32[1,32], index: 1, kind: input, shape index: {}]
  %s2 = inlined_call_operand.hbm [shape: f32[16,32], index: 2, kind: input, shape index: {}]
  %s3 = inlined_call_operand.hbm [shape: f32[32,128], index: 3, kind: input, shape index: {}]
  %s4 = inlined_call_operand.hbm [shape: f32[32,128], index: 4, kind: input, shape index: {}]
  %s5 = inlined_call_operand.vmem [shape: f32[1,128], index: 5, kind: input, shape index: {}]
  %s6 = inlined_call_operand.hbm [shape: f32[32,128], index: 6, kind: input, shape index: {}]
  %s7 = inlined_call_operand.vmem [shape: f32[1,128], index: 7, kind: input, shape index: {}]
  %s8 = inlined_call_operand.vmem [shape: f32[8,128], index: 8, kind: output, shape index: {}]
  %s9 = sld [smem:[#allocation0]]
  $region62: #{run.1} parent=0
    _
  %s11 = ssub.s32 1, %s9
  %s12 = scalar_select 0, %s11, %s9
  $region1: #{run.1} parent=0
    #allocation2 [shape = 'u8[512]{0}', space=smem, size = 0x200, scoped, tag = 'input window, operand 0, single buffered']
    #allocation3 [shape = 's32[1]{0}', space=sflag, size = 0x4, scoped, tag = 'scoped memory for run.1']
    #allocation4 [shape = 's32[1]{0}', space=sflag, size = 0x4, scoped, tag = 'scoped memory for run.1']
    #allocation5 [shape = 'u8[8192]{0}', space=vmem, size = 0x2000, scoped, tag = 'input window, operand 2, single buffered']
    #allocation6 [shape = 'u8[16384]{0}', space=vmem, size = 0x4000, scoped, tag = 'input window, operand 3, single buffered']
    #allocation7 [shape = 's32[1]{0}', space=sflag, size = 0x4, scoped, tag = 'scoped memory for run.1']
    #allocation8 [shape = 'u8[16384]{0}', space=vmem, size = 0x4000, scoped, tag = 'input window, operand 4, single buffered']
    #allocation9 [shape = 'u8[16384]{0}', space=vmem, size = 0x4000, scoped, tag = 'input window, operand 6, single buffered']
    #allocation10 [shape = 's32[1]{0}', space=sflag, size = 0x4, scoped, tag = 'scoped memory for run.1']
    %13 = vsyncpa [#allocation4], 0
    %14 = vsyncpa [#allocation3], 0
    %15 = vsyncpa [#allocation7], 0
    %16 = vsyncpa [#allocation10], 0
    // Predicated region
    $region2: #{run.1} parent=1 // pred_check
      _
    $region3: #{run.1} parent=1 // pred_check_branch
      %18 = sbr.rel (0) target = $region5
    $region4: #{run.1} parent=1 // pred_region
      %s20 = ssub.s32 16, 16
      %21 = vsyncadd [#allocation4], %s20
      %24 = dma.hbm_to_smem %s0, 16, [#allocation2], [#allocation4]
    $region5: #{run.1} parent=1 // pred_fallthru
      _
    // Predicated region
    $region6: #{run.1} parent=1 // pred_check
      _
    $region7: #{run.1} parent=1 // pred_check_branch
      %26 = sbr.rel (0) target = $region9
    $region8: #{run.1} parent=1 // pred_region
      _
    $region9: #{run.1} parent=1 // pred_fallthru
      _
    // Predicated region
    $region10: #{run.1} parent=1 // pred_check
      _
    $region11: #{run.1} parent=1 // pred_check_branch
      %28 = sbr.rel (0) target = $region13
    $region12: #{run.1} parent=1 // pred_region
      %s30 = ssub.s32 256, 256
      %31 = vsyncadd [#allocation3], %s30
      %s32 = sshll.u32 [#allocation5], 4
      %s33 = int_to_ptr.vmem [resolvable:$true] %s32
      %38 = dma.hbm_to_vmem [thread:$0]  %s2, 256, %s33, [#allocation3], 128, 128, 8
    $region13: #{run.1} parent=1 // pred_fallthru
      _
    // Predicated region
    $region14: #{run.1} parent=1 // pred_check
      _
    $region15: #{run.1} parent=1 // pred_check_branch
      %40 = sbr.rel (0) target = $region17
    $region16: #{run.1} parent=1 // pred_region
      %s42 = ssub.s32 512, 512
      %43 = vsyncadd [#allocation7], %s42
      %s44 = sshll.u32 [#allocation6], 4
      %s45 = int_to_ptr.vmem [resolvable:$true] %s44
      %50 = dma.hbm_to_vmem [thread:$0]  %s3, 512, %s45, [#allocation7], 128, 128, 8
    $region17: #{run.1} parent=1 // pred_fallthru
      _
    // Predicated region
    $region18: #{run.1} parent=1 // pred_check
      _
    $region19: #{run.1} parent=1 // pred_check_branch
      %52 = sbr.rel (0) target = $region21
    $region20: #{run.1} parent=1 // pred_region
      %s54 = ssub.s32 512, 512
      %55 = vsyncadd [#allocation7], %s54
      %s56 = sshll.u32 [#allocation8], 4
      %s57 = int_to_ptr.vmem [resolvable:$true] %s56
      %62 = dma.hbm_to_vmem [thread:$0]  %s4, 512, %s57, [#allocation7], 128, 128, 8
    $region21: #{run.1} parent=1 // pred_fallthru
      _
    // Predicated region
    $region22: #{run.1} parent=1 // pred_check
      _
    $region23: #{run.1} parent=1 // pred_check_branch
      %64 = sbr.rel (0) target = $region25
    $region24: #{run.1} parent=1 // pred_region
      _
    $region25: #{run.1} parent=1 // pred_fallthru
      _
    // Predicated region
    $region26: #{run.1} parent=1 // pred_check
      _
    $region27: #{run.1} parent=1 // pred_check_branch
      %66 = sbr.rel (0) target = $region29
    $region28: #{run.1} parent=1 // pred_region
      %s68 = ssub.s32 512, 512
      %69 = vsyncadd [#allocation10], %s68
      %s70 = sshll.u32 [#allocation9], 4
      %s71 = int_to_ptr.vmem [resolvable:$true] %s70
      %76 = dma.hbm_to_vmem [thread:$0]  %s6, 512, %s71, [#allocation10], 128, 128, 8
    $region29: #{run.1} parent=1 // pred_fallthru
      _
    // Predicated region
    $region30: #{run.1} parent=1 // pred_check
      _
    $region31: #{run.1} parent=1 // pred_check_branch
      %78 = sbr.rel (0) target = $region33
    $region32: #{run.1} parent=1 // pred_region
      _
    $region33: #{run.1} parent=1 // pred_fallthru
      _
    // Predicated region
    $region34: #{run.1} parent=1 // pred_check
      _
    $region35: #{run.1} parent=1 // pred_check_branch
      %80 = sbr.rel (0) target = $region37
    $region36: #{run.1} parent=1 // pred_region
      %81 = dma.done [#allocation4], 16
    $region37: #{run.1} parent=1 // pred_fallthru
      _
    // Predicated region
    $region38: #{run.1} parent=1 // pred_check
      _
    $region39: #{run.1} parent=1 // pred_check_branch
      %83 = sbr.rel (0) target = $region41
    $region40: #{run.1} parent=1 // pred_region
      %84 = dma.done [#allocation3], 256
    $region41: #{run.1} parent=1 // pred_fallthru
      _
    // Predicated region
    $region42: #{run.1} parent=1 // pred_check
      _
    $region43: #{run.1} parent=1 // pred_check_branch
      %86 = sbr.rel (0) target = $region45
    $region44: #{run.1} parent=1 // pred_region
      %87 = dma.done [#allocation7], 512
    $region45: #{run.1} parent=1 // pred_fallthru
      _
    // Predicated region
    $region46: #{run.1} parent=1 // pred_check
      _
    $region47: #{run.1} parent=1 // pred_check_branch
      %89 = sbr.rel (0) target = $region49
    $region48: #{run.1} parent=1 // pred_region
      %90 = dma.done [#allocation7], 512
    $region49: #{run.1} parent=1 // pred_fallthru
      _
    // Predicated region
    $region50: #{run.1} parent=1 // pred_check
      _
    $region51: #{run.1} parent=1 // pred_check_branch
      %92 = sbr.rel (0) target = $region53
    $region52: #{run.1} parent=1 // pred_region
      %93 = dma.done [#allocation10], 512
    $region53: #{run.1} parent=1 // pred_fallthru
      _
    %94 = sfence
    %s95 = sld [smem:[#allocation2]]
    %s96 = scalar_lea.vmem [#allocation5], %s95
    %v97 = vld [vmem:[%s96] sm:$0x1]
    %v98 = vmax.f32 %v97, 0.0
    %s99 = sld [smem:[#allocation2 + $0x1]]
    %s100 = scalar_lea.vmem [#allocation5], %s99
    %v101 = vld [vmem:[%s100] sm:$0x1]
    %v102 = vmax.f32 %v101, 0.0
    %s103 = sld [smem:[#allocation2 + $0x2]]
    %s104 = scalar_lea.vmem [#allocation5], %s103
    %v105 = vld [vmem:[%s104] sm:$0x1]
    %v106 = vmax.f32 %v105, 0.0
    %s107 = sld [smem:[#allocation2 + $0x3]]
    %s108 = scalar_lea.vmem [#allocation5], %s107
    %v109 = vld [vmem:[%s108] sm:$0x1]
    %v110 = vmax.f32 %v109, 0.0
    %s111 = sld [smem:[#allocation2 + $0x4]]
    %s112 = scalar_lea.vmem [#allocation5], %s111
    %v113 = vld [vmem:[%s112] sm:$0x1]
    %v114 = vmax.f32 %v113, 0.0
    %s115 = sld [smem:[#allocation2 + $0x5]]
    %s116 = scalar_lea.vmem [#allocation5], %s115
    %v117 = vld [vmem:[%s116] sm:$0x1]
    %v118 = vmax.f32 %v117, 0.0
    %s119 = sld [smem:[#allocation2 + $0x6]]
    %s120 = scalar_lea.vmem [#allocation5], %s119
    %v121 = vld [vmem:[%s120] sm:$0x1]
    %v122 = vmax.f32 %v121, 0.0
    %s123 = sld [smem:[#allocation2 + $0x7]]
    %s124 = scalar_lea.vmem [#allocation5], %s123
    %v125 = vld [vmem:[%s124] sm:$0x1]
    %v126 = vmax.f32 %v125, 0.0
    %v128 = vrot.slane %v102, 7
    %v131 = vrot.slane %v106, 6
    %v134 = vrot.slane %v110, 5
    %v137 = vrot.slane %v114, 4
    %v140 = vrot.slane %v118, 3
    %v143 = vrot.slane %v122, 2
    %v146 = vrot.slane %v126, 1
    %vm148 = vcmask 1040384
    %v149 = vsel %vm148, %v98, %v128
    %vm150 = vcmask 1041408
    %v151 = vsel %vm150, %v149, %v131
    %vm152 = vcmask 1042432
    %v153 = vsel %vm152, %v151, %v134
    %vm154 = vcmask 1043456
    %v155 = vsel %vm154, %v153, %v137
    %vm156 = vcmask 1044480
    %v157 = vsel %vm156, %v155, %v140
    %vm158 = vcmask 1045504
    %v159 = vsel %vm158, %v157, %v143
    %vm160 = vcmask 1046528
    %v161 = vsel %vm160, %v159, %v146
    %v162 = vld [vmem:[#allocation6] sm:$0xff]
    %v163 = vld [vmem:[#allocation6 + $0x8] sm:$0xff]
    %v164 = vld [vmem:[#allocation6 + $0x10] sm:$0xff]
    %v165 = vld [vmem:[#allocation6 + $0x18] sm:$0xff]
    %v166 = vld [vmem:[%s5] sm:$0x1]
    %v168 = vlaneseq
    %v169 = vshrl.u32 %v168, 7
    %v170 = vsub.s32 0, %v169
    %v171 = vrot.slane %v166, %v170
    %vm173 = vcmask 261120
    %v175 = vsel %vm173, %v161, 0
    %177 = vmatprep.subr.mxu0 0.0
    %178 = vmatpush1.msra.mxu0 %v162
    %179 = vmatprep.subr.mxu0 0.0
    %180 = vmatpush1.msra.mxu0 %v163
    %181 = vmatprep.subr.mxu0 0.0
    %182 = vmatpush1.msra.mxu0 %v164
    %183 = vmatprep.subr.mxu0 0.0
    %184 = vmatpush1.msra.mxu0 %v165
    %185 = vmatprep.subr.mxu0 0.0
    %186 = vmatpush1.msra.mxu0 0.0
    %187 = vmatprep.subr.mxu0 0.0
    %188 = vmatpush1.msra.mxu0 0.0
    %189 = vmatprep.subr.mxu0 0.0
    %190 = vmatpush1.msra.mxu0 0.0
    %191 = vmatprep.subr.mxu0 0.0
    %192 = vmatpush1.msra.mxu0 0.0
    %193 = vmatprep.subr.mxu0 0.0
    %194 = vmatpush1.msra.mxu0 0.0
    %195 = vmatprep.subr.mxu0 0.0
    %196 = vmatpush1.msra.mxu0 0.0
    %197 = vmatprep.subr.mxu0 0.0
    %198 = vmatpush1.msra.mxu0 0.0
    %199 = vmatprep.subr.mxu0 0.0
    %200 = vmatpush1.msra.mxu0 0.0
    %201 = vmatprep.subr.mxu0 0.0
    %202 = vmatpush1.msra.mxu0 0.0
    %203 = vmatprep.subr.mxu0 0.0
    %204 = vmatpush1.msra.mxu0 0.0
    %205 = vmatprep.subr.mxu0 0.0
    %206 = vmatpush1.msra.mxu0 0.0
    %207 = vmatprep.subr.mxu0 0.0
    %208 = vmatpush1.msra.mxu0 0.0
    %209 = vmatprep.subr.mxu0 0.0
    %210 = vmatpush1.msra.mxu0 0.0
    %211 = vmatprep.subr.mxu0 0.0
    %212 = vmatpush1.msra.mxu0 0.0
    %213 = vmatprep.subr.mxu0 0.0
    %214 = vmatpush1.msra.mxu0 0.0
    %215 = vmatprep.subr.mxu0 0.0
    %216 = vmatpush1.msra.mxu0 0.0
    %217 = vmatprep.subr.mxu0 0.0
    %218 = vmatpush1.msra.mxu0 0.0
    %219 = vmatprep.subr.mxu0 0.0
    %220 = vmatpush1.msra.mxu0 0.0
    %221 = vmatprep.subr.mxu0 0.0
    %222 = vmatpush1.msra.mxu0 0.0
    %223 = vmatprep.subr.mxu0 0.0
    %224 = vmatpush1.msra.mxu0 0.0
    %225 = vmatprep.subr.mxu0 0.0
    %226 = vmatpush1.msra.mxu0 0.0
    %227 = vmatprep.subr.mxu0 0.0
    %228 = vmatpush1.msra.mxu0 0.0
    %229 = vmatprep.subr.mxu0 0.0
    %230 = vmatpush1.msra.mxu0 0.0
    %231 = vmatprep.subr.mxu0 0.0
    %232 = vmatpush1.msra.mxu0 0.0
    %233 = vmatprep.subr.mxu0 0.0
    %234 = vmatpush1.msra.mxu0 0.0
    %235 = vmatprep.subr.mxu0 0.0
    %236 = vmatpush1.msra.mxu0 0.0
    %237 = vmatprep.subr.mxu0 0.0
    %238 = vmatpush1.msra.mxu0 0.0
    %239 = vmatprep.subr.mxu0 0.0
    %240 = vmatpush1.msra.mxu0 0.0
    %241 = vmatprep.mubr.f32.mxu0 0.0
    %242 = vmatmul.mubr.f32.gmra.mrb[0].mxu0 %v175
    %v243 = vpop.f32.mrb[0].mxu0
    %v244 = vadd.f32 %v171, %v243
    %v245 = vpop.f32.mrb[0].mxu0
    %246 = vdwg.mxu0
    %v247 = vld [vmem:[%s1] sm:$0x1]
    %v248 = vld [vmem:[#allocation8] sm:$0xff]
    %v249 = vld [vmem:[#allocation8 + $0x8] sm:$0xff]
    %v250 = vld [vmem:[#allocation8 + $0x10] sm:$0xff]
    %v251 = vld [vmem:[#allocation8 + $0x18] sm:$0xff]
    %v253 = vsel %vm173, %v247, 0
    %255 = vmatprep.subr.mxu0 0.0
    %256 = vmatpush1.msra.mxu0 %v248
    %257 = vmatprep.subr.mxu0 0.0
    %258 = vmatpush1.msra.mxu0 %v249
    %259 = vmatprep.subr.mxu0 0.0
    %260 = vmatpush1.msra.mxu0 %v250
    %261 = vmatprep.subr.mxu0 0.0
    %262 = vmatpush1.msra.mxu0 %v251
    %263 = vmatprep.subr.mxu0 0.0
    %264 = vmatpush1.msra.mxu0 0.0
    %265 = vmatprep.subr.mxu0 0.0
    %266 = vmatpush1.msra.mxu0 0.0
    %267 = vmatprep.subr.mxu0 0.0
    %268 = vmatpush1.msra.mxu0 0.0
    %269 = vmatprep.subr.mxu0 0.0
    %270 = vmatpush1.msra.mxu0 0.0
    %271 = vmatprep.subr.mxu0 0.0
    %272 = vmatpush1.msra.mxu0 0.0
    %273 = vmatprep.subr.mxu0 0.0
    %274 = vmatpush1.msra.mxu0 0.0
    %275 = vmatprep.subr.mxu0 0.0
    %276 = vmatpush1.msra.mxu0 0.0
    %277 = vmatprep.subr.mxu0 0.0
    %278 = vmatpush1.msra.mxu0 0.0
    %279 = vmatprep.subr.mxu0 0.0
    %280 = vmatpush1.msra.mxu0 0.0
    %281 = vmatprep.subr.mxu0 0.0
    %282 = vmatpush1.msra.mxu0 0.0
    %283 = vmatprep.subr.mxu0 0.0
    %284 = vmatpush1.msra.mxu0 0.0
    %285 = vmatprep.subr.mxu0 0.0
    %286 = vmatpush1.msra.mxu0 0.0
    %287 = vmatprep.subr.mxu0 0.0
    %288 = vmatpush1.msra.mxu0 0.0
    %289 = vmatprep.subr.mxu0 0.0
    %290 = vmatpush1.msra.mxu0 0.0
    %291 = vmatprep.subr.mxu0 0.0
    %292 = vmatpush1.msra.mxu0 0.0
    %293 = vmatprep.subr.mxu0 0.0
    %294 = vmatpush1.msra.mxu0 0.0
    %295 = vmatprep.subr.mxu0 0.0
    %296 = vmatpush1.msra.mxu0 0.0
    %297 = vmatprep.subr.mxu0 0.0
    %298 = vmatpush1.msra.mxu0 0.0
    %299 = vmatprep.subr.mxu0 0.0
    %300 = vmatpush1.msra.mxu0 0.0
    %301 = vmatprep.subr.mxu0 0.0
    %302 = vmatpush1.msra.mxu0 0.0
    %303 = vmatprep.subr.mxu0 0.0
    %304 = vmatpush1.msra.mxu0 0.0
    %305 = vmatprep.subr.mxu0 0.0
    %306 = vmatpush1.msra.mxu0 0.0
    %307 = vmatprep.subr.mxu0 0.0
    %308 = vmatpush1.msra.mxu0 0.0
    %309 = vmatprep.subr.mxu0 0.0
    %310 = vmatpush1.msra.mxu0 0.0
    %311 = vmatprep.subr.mxu0 0.0
    %312 = vmatpush1.msra.mxu0 0.0
    %313 = vmatprep.subr.mxu0 0.0
    %314 = vmatpush1.msra.mxu0 0.0
    %315 = vmatprep.subr.mxu0 0.0
    %316 = vmatpush1.msra.mxu0 0.0
    %317 = vmatprep.subr.mxu0 0.0
    %318 = vmatpush1.msra.mxu0 0.0
    %319 = vmatprep.mubr.f32.mxu0 0.0
    %320 = vmatmul.mubr.f32.gmra.mrb[0].mxu0 %v253
    %v321 = vpop.f32.mrb[0].mxu0
    %v322 = vadd.f32 %v244, %v321
    %v323 = vpop.f32.mrb[0].mxu0
    %324 = vdwg.mxu0
    %v325 = vxor.u32 %v322, 2147483648
    %v326 = vmul.f32 %v325, 1.442695
    %v327 = vpow.pop %v326
    %v328 = vadd.f32 %v327, 1.0
    %v329 = vrcp.pop %v328
    %v330 = vmul.f32 1.0, %v329
    %332 = vrot.lane.b32.xlu0 %v322, 32
    %v333 = vpop.permute.xlu0 %332
    %v335 = vmul.f32 %v330, %v333
    %337 = vrot.lane.b32.xlu0 %v335, 64
    %v338 = vpop.permute.xlu0 %337
    %v340 = vadd.f32 %v322, %v338
    %v341 = vtanh.pop %v340
    %v342 = vsub.f32 1.0, %v330
    %344 = vrot.lane.b32.xlu0 %v341, 96
    %v345 = vpop.permute.xlu0 %344
    %v347 = vmul.f32 %v342, %v345
    %v348 = vlaneseq
    %v349 = vshrl.u32 %v348, 7
    %v350 = vsub.s32 0, %v349
    %v351 = vrot.slane %v247, %v350
    %352 = vrot.lane.b32.xlu0 %v351, 32
    %v353 = vpop.permute.xlu0 %352
    %v355 = vmul.f32 %v330, %v353
    %v356 = vadd.f32 %v347, %v355
    %358 = vrot.lane.b32.xlu0 %v356, 96
    %v359 = vpop.permute.xlu0 %358
    %v361 = vrot.slane %v244, 1
    %v363 = vsel %vm173, %v359, 0
    %365 = vmatprep.subr.mxu0 0.0
    %366 = vmatpush1.msra.mxu0 %v248
    %367 = vmatprep.subr.mxu0 0.0
    %368 = vmatpush1.msra.mxu0 %v249
    %369 = vmatprep.subr.mxu0 0.0
    %370 = vmatpush1.msra.mxu0 %v250
    %371 = vmatprep.subr.mxu0 0.0
    %372 = vmatpush1.msra.mxu0 %v251
    %373 = vmatprep.subr.mxu0 0.0
    %374 = vmatpush1.msra.mxu0 0.0
    %375 = vmatprep.subr.mxu0 0.0
    %376 = vmatpush1.msra.mxu0 0.0
    %377 = vmatprep.subr.mxu0 0.0
    %378 = vmatpush1.msra.mxu0 0.0
    %379 = vmatprep.subr.mxu0 0.0
    %380 = vmatpush1.msra.mxu0 0.0
    %381 = vmatprep.subr.mxu0 0.0
    %382 = vmatpush1.msra.mxu0 0.0
    %383 = vmatprep.subr.mxu0 0.0
    %384 = vmatpush1.msra.mxu0 0.0
    %385 = vmatprep.subr.mxu0 0.0
    %386 = vmatpush1.msra.mxu0 0.0
    %387 = vmatprep.subr.mxu0 0.0
    %388 = vmatpush1.msra.mxu0 0.0
    %389 = vmatprep.subr.mxu0 0.0
    %390 = vmatpush1.msra.mxu0 0.0
    %391 = vmatprep.subr.mxu0 0.0
    %392 = vmatpush1.msra.mxu0 0.0
    %393 = vmatprep.subr.mxu0 0.0
    %394 = vmatpush1.msra.mxu0 0.0
    %395 = vmatprep.subr.mxu0 0.0
    %396 = vmatpush1.msra.mxu0 0.0
    %397 = vmatprep.subr.mxu0 0.0
    %398 = vmatpush1.msra.mxu0 0.0
    %399 = vmatprep.subr.mxu0 0.0
    %400 = vmatpush1.msra.mxu0 0.0
    %401 = vmatprep.subr.mxu0 0.0
    %402 = vmatpush1.msra.mxu0 0.0
    %403 = vmatprep.subr.mxu0 0.0
    %404 = vmatpush1.msra.mxu0 0.0
    %405 = vmatprep.subr.mxu0 0.0
    %406 = vmatpush1.msra.mxu0 0.0
    %407 = vmatprep.subr.mxu0 0.0
    %408 = vmatpush1.msra.mxu0 0.0
    %409 = vmatprep.subr.mxu0 0.0
    %410 = vmatpush1.msra.mxu0 0.0
    %411 = vmatprep.subr.mxu0 0.0
    %412 = vmatpush1.msra.mxu0 0.0
    %413 = vmatprep.subr.mxu0 0.0
    %414 = vmatpush1.msra.mxu0 0.0
    %415 = vmatprep.subr.mxu0 0.0
    %416 = vmatpush1.msra.mxu0 0.0
    %417 = vmatprep.subr.mxu0 0.0
    %418 = vmatpush1.msra.mxu0 0.0
    %419 = vmatprep.subr.mxu0 0.0
    %420 = vmatpush1.msra.mxu0 0.0
    %421 = vmatprep.subr.mxu0 0.0
    %422 = vmatpush1.msra.mxu0 0.0
    %423 = vmatprep.subr.mxu0 0.0
    %424 = vmatpush1.msra.mxu0 0.0
    %425 = vmatprep.subr.mxu0 0.0
    %426 = vmatpush1.msra.mxu0 0.0
    %427 = vmatprep.subr.mxu0 0.0
    %428 = vmatpush1.msra.mxu0 0.0
    %429 = vmatprep.mubr.f32.mxu0 0.0
    %430 = vmatmul.mubr.f32.gmra.mrb[0].mxu0 %v363
    %v431 = vpop.f32.mrb[0].mxu0
    %v432 = vadd.f32 %v361, %v431
    %v433 = vpop.f32.mrb[0].mxu0
    %434 = vdwg.mxu0
    %v435 = vxor.u32 %v432, 2147483648
    %v436 = vmul.f32 %v435, 1.442695
    %v437 = vpow.pop %v436
    %v438 = vadd.f32 %v437, 1.0
    %v439 = vrcp.pop %v438
    %v440 = vmul.f32 1.0, %v439
    %442 = vrot.lane.b32.xlu0 %v432, 32
    %v443 = vpop.permute.xlu0 %442
    %v445 = vmul.f32 %v440, %v443
    %447 = vrot.lane.b32.xlu0 %v445, 64
    %v448 = vpop.permute.xlu0 %447
    %v450 = vadd.f32 %v432, %v448
    %v451 = vtanh.pop %v450
    %v452 = vsub.f32 1.0, %v440
    %454 = vrot.lane.b32.xlu0 %v451, 96
    %v455 = vpop.permute.xlu0 %454
    %v457 = vmul.f32 %v452, %v455
    %v458 = vmul.f32 %v440, %v356
    %v459 = vadd.f32 %v457, %v458
    %461 = vrot.lane.b32.xlu0 %v459, 96
    %v462 = vpop.permute.xlu0 %461
    %v463 = vrot.slane %v244, 2
    %v465 = vsel %vm173, %v462, 0
    %467 = vmatprep.subr.mxu0 0.0
    %468 = vmatpush1.msra.mxu0 %v248
    %469 = vmatprep.subr.mxu0 0.0
    %470 = vmatpush1.msra.mxu0 %v249
    %471 = vmatprep.subr.mxu0 0.0
    %472 = vmatpush1.msra.mxu0 %v250
    %473 = vmatprep.subr.mxu0 0.0
    %474 = vmatpush1.msra.mxu0 %v251
    %475 = vmatprep.subr.mxu0 0.0
    %476 = vmatpush1.msra.mxu0 0.0
    %477 = vmatprep.subr.mxu0 0.0
    %478 = vmatpush1.msra.mxu0 0.0
    %479 = vmatprep.subr.mxu0 0.0
    %480 = vmatpush1.msra.mxu0 0.0
    %481 = vmatprep.subr.mxu0 0.0
    %482 = vmatpush1.msra.mxu0 0.0
    %483 = vmatprep.subr.mxu0 0.0
    %484 = vmatpush1.msra.mxu0 0.0
    %485 = vmatprep.subr.mxu0 0.0
    %486 = vmatpush1.msra.mxu0 0.0
    %487 = vmatprep.subr.mxu0 0.0
    %488 = vmatpush1.msra.mxu0 0.0
    %489 = vmatprep.subr.mxu0 0.0
    %490 = vmatpush1.msra.mxu0 0.0
    %491 = vmatprep.subr.mxu0 0.0
    %492 = vmatpush1.msra.mxu0 0.0
    %493 = vmatprep.subr.mxu0 0.0
    %494 = vmatpush1.msra.mxu0 0.0
    %495 = vmatprep.subr.mxu0 0.0
    %496 = vmatpush1.msra.mxu0 0.0
    %497 = vmatprep.subr.mxu0 0.0
    %498 = vmatpush1.msra.mxu0 0.0
    %499 = vmatprep.subr.mxu0 0.0
    %500 = vmatpush1.msra.mxu0 0.0
    %501 = vmatprep.subr.mxu0 0.0
    %502 = vmatpush1.msra.mxu0 0.0
    %503 = vmatprep.subr.mxu0 0.0
    %504 = vmatpush1.msra.mxu0 0.0
    %505 = vmatprep.subr.mxu0 0.0
    %506 = vmatpush1.msra.mxu0 0.0
    %507 = vmatprep.subr.mxu0 0.0
    %508 = vmatpush1.msra.mxu0 0.0
    %509 = vmatprep.subr.mxu0 0.0
    %510 = vmatpush1.msra.mxu0 0.0
    %511 = vmatprep.subr.mxu0 0.0
    %512 = vmatpush1.msra.mxu0 0.0
    %513 = vmatprep.subr.mxu0 0.0
    %514 = vmatpush1.msra.mxu0 0.0
    %515 = vmatprep.subr.mxu0 0.0
    %516 = vmatpush1.msra.mxu0 0.0
    %517 = vmatprep.subr.mxu0 0.0
    %518 = vmatpush1.msra.mxu0 0.0
    %519 = vmatprep.subr.mxu0 0.0
    %520 = vmatpush1.msra.mxu0 0.0
    %521 = vmatprep.subr.mxu0 0.0
    %522 = vmatpush1.msra.mxu0 0.0
    %523 = vmatprep.subr.mxu0 0.0
    %524 = vmatpush1.msra.mxu0 0.0
    %525 = vmatprep.subr.mxu0 0.0
    %526 = vmatpush1.msra.mxu0 0.0
    %527 = vmatprep.subr.mxu0 0.0
    %528 = vmatpush1.msra.mxu0 0.0
    %529 = vmatprep.subr.mxu0 0.0
    %530 = vmatpush1.msra.mxu0 0.0
    %531 = vmatprep.mubr.f32.mxu0 0.0
    %532 = vmatmul.mubr.f32.gmra.mrb[0].mxu0 %v465
    %v533 = vpop.f32.mrb[0].mxu0
    %v534 = vadd.f32 %v463, %v533
    %v535 = vpop.f32.mrb[0].mxu0
    %536 = vdwg.mxu0
    %v537 = vxor.u32 %v534, 2147483648
    %v538 = vmul.f32 %v537, 1.442695
    %v539 = vpow.pop %v538
    %v540 = vadd.f32 %v539, 1.0
    %v541 = vrcp.pop %v540
    %v542 = vmul.f32 1.0, %v541
    %544 = vrot.lane.b32.xlu0 %v534, 32
    %v545 = vpop.permute.xlu0 %544
    %v547 = vmul.f32 %v542, %v545
    %549 = vrot.lane.b32.xlu0 %v547, 64
    %v550 = vpop.permute.xlu0 %549
    %v552 = vadd.f32 %v534, %v550
    %v553 = vtanh.pop %v552
    %v554 = vsub.f32 1.0, %v542
    %556 = vrot.lane.b32.xlu0 %v553, 96
    %v557 = vpop.permute.xlu0 %556
    %v559 = vmul.f32 %v554, %v557
    %v560 = vmul.f32 %v542, %v459
    %v561 = vadd.f32 %v559, %v560
    %563 = vrot.lane.b32.xlu0 %v561, 96
    %v564 = vpop.permute.xlu0 %563
    %v565 = vrot.slane %v244, 3
    %v567 = vsel %vm173, %v564, 0
    %569 = vmatprep.subr.mxu0 0.0
    %570 = vmatpush1.msra.mxu0 %v248
    %571 = vmatprep.subr.mxu0 0.0
    %572 = vmatpush1.msra.mxu0 %v249
    %573 = vmatprep.subr.mxu0 0.0
    %574 = vmatpush1.msra.mxu0 %v250
    %575 = vmatprep.subr.mxu0 0.0
    %576 = vmatpush1.msra.mxu0 %v251
    %577 = vmatprep.subr.mxu0 0.0
    %578 = vmatpush1.msra.mxu0 0.0
    %579 = vmatprep.subr.mxu0 0.0
    %580 = vmatpush1.msra.mxu0 0.0
    %581 = vmatprep.subr.mxu0 0.0
    %582 = vmatpush1.msra.mxu0 0.0
    %583 = vmatprep.subr.mxu0 0.0
    %584 = vmatpush1.msra.mxu0 0.0
    %585 = vmatprep.subr.mxu0 0.0
    %586 = vmatpush1.msra.mxu0 0.0
    %587 = vmatprep.subr.mxu0 0.0
    %588 = vmatpush1.msra.mxu0 0.0
    %589 = vmatprep.subr.mxu0 0.0
    %590 = vmatpush1.msra.mxu0 0.0
    %591 = vmatprep.subr.mxu0 0.0
    %592 = vmatpush1.msra.mxu0 0.0
    %593 = vmatprep.subr.mxu0 0.0
    %594 = vmatpush1.msra.mxu0 0.0
    %595 = vmatprep.subr.mxu0 0.0
    %596 = vmatpush1.msra.mxu0 0.0
    %597 = vmatprep.subr.mxu0 0.0
    %598 = vmatpush1.msra.mxu0 0.0
    %599 = vmatprep.subr.mxu0 0.0
    %600 = vmatpush1.msra.mxu0 0.0
    %601 = vmatprep.subr.mxu0 0.0
    %602 = vmatpush1.msra.mxu0 0.0
    %603 = vmatprep.subr.mxu0 0.0
    %604 = vmatpush1.msra.mxu0 0.0
    %605 = vmatprep.subr.mxu0 0.0
    %606 = vmatpush1.msra.mxu0 0.0
    %607 = vmatprep.subr.mxu0 0.0
    %608 = vmatpush1.msra.mxu0 0.0
    %609 = vmatprep.subr.mxu0 0.0
    %610 = vmatpush1.msra.mxu0 0.0
    %611 = vmatprep.subr.mxu0 0.0
    %612 = vmatpush1.msra.mxu0 0.0
    %613 = vmatprep.subr.mxu0 0.0
    %614 = vmatpush1.msra.mxu0 0.0
    %615 = vmatprep.subr.mxu0 0.0
    %616 = vmatpush1.msra.mxu0 0.0
    %617 = vmatprep.subr.mxu0 0.0
    %618 = vmatpush1.msra.mxu0 0.0
    %619 = vmatprep.subr.mxu0 0.0
    %620 = vmatpush1.msra.mxu0 0.0
    %621 = vmatprep.subr.mxu0 0.0
    %622 = vmatpush1.msra.mxu0 0.0
    %623 = vmatprep.subr.mxu0 0.0
    %624 = vmatpush1.msra.mxu0 0.0
    %625 = vmatprep.subr.mxu0 0.0
    %626 = vmatpush1.msra.mxu0 0.0
    %627 = vmatprep.subr.mxu0 0.0
    %628 = vmatpush1.msra.mxu0 0.0
    %629 = vmatprep.subr.mxu0 0.0
    %630 = vmatpush1.msra.mxu0 0.0
    %631 = vmatprep.subr.mxu0 0.0
    %632 = vmatpush1.msra.mxu0 0.0
    %633 = vmatprep.mubr.f32.mxu0 0.0
    %634 = vmatmul.mubr.f32.gmra.mrb[0].mxu0 %v567
    %v635 = vpop.f32.mrb[0].mxu0
    %v636 = vadd.f32 %v565, %v635
    %v637 = vpop.f32.mrb[0].mxu0
    %638 = vdwg.mxu0
    %v639 = vxor.u32 %v636, 2147483648
    %v640 = vmul.f32 %v639, 1.442695
    %v641 = vpow.pop %v640
    %v642 = vadd.f32 %v641, 1.0
    %v643 = vrcp.pop %v642
    %v644 = vmul.f32 1.0, %v643
    %646 = vrot.lane.b32.xlu0 %v636, 32
    %v647 = vpop.permute.xlu0 %646
    %v649 = vmul.f32 %v644, %v647
    %651 = vrot.lane.b32.xlu0 %v649, 64
    %v652 = vpop.permute.xlu0 %651
    %v654 = vadd.f32 %v636, %v652
    %v655 = vtanh.pop %v654
    %v656 = vsub.f32 1.0, %v644
    %658 = vrot.lane.b32.xlu0 %v655, 96
    %v659 = vpop.permute.xlu0 %658
    %v661 = vmul.f32 %v656, %v659
    %v662 = vmul.f32 %v644, %v561
    %v663 = vadd.f32 %v661, %v662
    %665 = vrot.lane.b32.xlu0 %v663, 96
    %v666 = vpop.permute.xlu0 %665
    %v667 = vrot.slane %v244, 4
    %v669 = vsel %vm173, %v666, 0
    %671 = vmatprep.subr.mxu0 0.0
    %672 = vmatpush1.msra.mxu0 %v248
    %673 = vmatprep.subr.mxu0 0.0
    %674 = vmatpush1.msra.mxu0 %v249
    %675 = vmatprep.subr.mxu0 0.0
    %676 = vmatpush1.msra.mxu0 %v250
    %677 = vmatprep.subr.mxu0 0.0
    %678 = vmatpush1.msra.mxu0 %v251
    %679 = vmatprep.subr.mxu0 0.0
    %680 = vmatpush1.msra.mxu0 0.0
    %681 = vmatprep.subr.mxu0 0.0
    %682 = vmatpush1.msra.mxu0 0.0
    %683 = vmatprep.subr.mxu0 0.0
    %684 = vmatpush1.msra.mxu0 0.0
    %685 = vmatprep.subr.mxu0 0.0
    %686 = vmatpush1.msra.mxu0 0.0
    %687 = vmatprep.subr.mxu0 0.0
    %688 = vmatpush1.msra.mxu0 0.0
    %689 = vmatprep.subr.mxu0 0.0
    %690 = vmatpush1.msra.mxu0 0.0
    %691 = vmatprep.subr.mxu0 0.0
    %692 = vmatpush1.msra.mxu0 0.0
    %693 = vmatprep.subr.mxu0 0.0
    %694 = vmatpush1.msra.mxu0 0.0
    %695 = vmatprep.subr.mxu0 0.0
    %696 = vmatpush1.msra.mxu0 0.0
    %697 = vmatprep.subr.mxu0 0.0
    %698 = vmatpush1.msra.mxu0 0.0
    %699 = vmatprep.subr.mxu0 0.0
    %700 = vmatpush1.msra.mxu0 0.0
    %701 = vmatprep.subr.mxu0 0.0
    %702 = vmatpush1.msra.mxu0 0.0
    %703 = vmatprep.subr.mxu0 0.0
    %704 = vmatpush1.msra.mxu0 0.0
    %705 = vmatprep.subr.mxu0 0.0
    %706 = vmatpush1.msra.mxu0 0.0
    %707 = vmatprep.subr.mxu0 0.0
    %708 = vmatpush1.msra.mxu0 0.0
    %709 = vmatprep.subr.mxu0 0.0
    %710 = vmatpush1.msra.mxu0 0.0
    %711 = vmatprep.subr.mxu0 0.0
    %712 = vmatpush1.msra.mxu0 0.0
    %713 = vmatprep.subr.mxu0 0.0
    %714 = vmatpush1.msra.mxu0 0.0
    %715 = vmatprep.subr.mxu0 0.0
    %716 = vmatpush1.msra.mxu0 0.0
    %717 = vmatprep.subr.mxu0 0.0
    %718 = vmatpush1.msra.mxu0 0.0
    %719 = vmatprep.subr.mxu0 0.0
    %720 = vmatpush1.msra.mxu0 0.0
    %721 = vmatprep.subr.mxu0 0.0
    %722 = vmatpush1.msra.mxu0 0.0
    %723 = vmatprep.subr.mxu0 0.0
    %724 = vmatpush1.msra.mxu0 0.0
    %725 = vmatprep.subr.mxu0 0.0
    %726 = vmatpush1.msra.mxu0 0.0
    %727 = vmatprep.subr.mxu0 0.0
    %728 = vmatpush1.msra.mxu0 0.0
    %729 = vmatprep.subr.mxu0 0.0
    %730 = vmatpush1.msra.mxu0 0.0
    %731 = vmatprep.subr.mxu0 0.0
    %732 = vmatpush1.msra.mxu0 0.0
    %733 = vmatprep.subr.mxu0 0.0
    %734 = vmatpush1.msra.mxu0 0.0
    %735 = vmatprep.mubr.f32.mxu0 0.0
    %736 = vmatmul.mubr.f32.gmra.mrb[0].mxu0 %v669
    %v737 = vpop.f32.mrb[0].mxu0
    %v738 = vadd.f32 %v667, %v737
    %v739 = vpop.f32.mrb[0].mxu0
    %740 = vdwg.mxu0
    %v741 = vxor.u32 %v738, 2147483648
    %v742 = vmul.f32 %v741, 1.442695
    %v743 = vpow.pop %v742
    %v744 = vadd.f32 %v743, 1.0
    %v745 = vrcp.pop %v744
    %v746 = vmul.f32 1.0, %v745
    %748 = vrot.lane.b32.xlu0 %v738, 32
    %v749 = vpop.permute.xlu0 %748
    %v751 = vmul.f32 %v746, %v749
    %753 = vrot.lane.b32.xlu0 %v751, 64
    %v754 = vpop.permute.xlu0 %753
    %v756 = vadd.f32 %v738, %v754
    %v757 = vtanh.pop %v756
    %v758 = vsub.f32 1.0, %v746
    %760 = vrot.lane.b32.xlu0 %v757, 96
    %v761 = vpop.permute.xlu0 %760
    %v763 = vmul.f32 %v758, %v761
    %v764 = vmul.f32 %v746, %v663
    %v765 = vadd.f32 %v763, %v764
    %767 = vrot.lane.b32.xlu0 %v765, 96
    %v768 = vpop.permute.xlu0 %767
    %v769 = vrot.slane %v244, 5
    %v771 = vsel %vm173, %v768, 0
    %773 = vmatprep.subr.mxu0 0.0
    %774 = vmatpush1.msra.mxu0 %v248
    %775 = vmatprep.subr.mxu0 0.0
    %776 = vmatpush1.msra.mxu0 %v249
    %777 = vmatprep.subr.mxu0 0.0
    %778 = vmatpush1.msra.mxu0 %v250
    %779 = vmatprep.subr.mxu0 0.0
    %780 = vmatpush1.msra.mxu0 %v251
    %781 = vmatprep.subr.mxu0 0.0
    %782 = vmatpush1.msra.mxu0 0.0
    %783 = vmatprep.subr.mxu0 0.0
    %784 = vmatpush1.msra.mxu0 0.0
    %785 = vmatprep.subr.mxu0 0.0
    %786 = vmatpush1.msra.mxu0 0.0
    %787 = vmatprep.subr.mxu0 0.0
    %788 = vmatpush1.msra.mxu0 0.0
    %789 = vmatprep.subr.mxu0 0.0
    %790 = vmatpush1.msra.mxu0 0.0
    %791 = vmatprep.subr.mxu0 0.0
    %792 = vmatpush1.msra.mxu0 0.0
    %793 = vmatprep.subr.mxu0 0.0
    %794 = vmatpush1.msra.mxu0 0.0
    %795 = vmatprep.subr.mxu0 0.0
    %796 = vmatpush1.msra.mxu0 0.0
    %797 = vmatprep.subr.mxu0 0.0
    %798 = vmatpush1.msra.mxu0 0.0
    %799 = vmatprep.subr.mxu0 0.0
    %800 = vmatpush1.msra.mxu0 0.0
    %801 = vmatprep.subr.mxu0 0.0
    %802 = vmatpush1.msra.mxu0 0.0
    %803 = vmatprep.subr.mxu0 0.0
    %804 = vmatpush1.msra.mxu0 0.0
    %805 = vmatprep.subr.mxu0 0.0
    %806 = vmatpush1.msra.mxu0 0.0
    %807 = vmatprep.subr.mxu0 0.0
    %808 = vmatpush1.msra.mxu0 0.0
    %809 = vmatprep.subr.mxu0 0.0
    %810 = vmatpush1.msra.mxu0 0.0
    %811 = vmatprep.subr.mxu0 0.0
    %812 = vmatpush1.msra.mxu0 0.0
    %813 = vmatprep.subr.mxu0 0.0
    %814 = vmatpush1.msra.mxu0 0.0
    %815 = vmatprep.subr.mxu0 0.0
    %816 = vmatpush1.msra.mxu0 0.0
    %817 = vmatprep.subr.mxu0 0.0
    %818 = vmatpush1.msra.mxu0 0.0
    %819 = vmatprep.subr.mxu0 0.0
    %820 = vmatpush1.msra.mxu0 0.0
    %821 = vmatprep.subr.mxu0 0.0
    %822 = vmatpush1.msra.mxu0 0.0
    %823 = vmatprep.subr.mxu0 0.0
    %824 = vmatpush1.msra.mxu0 0.0
    %825 = vmatprep.subr.mxu0 0.0
    %826 = vmatpush1.msra.mxu0 0.0
    %827 = vmatprep.subr.mxu0 0.0
    %828 = vmatpush1.msra.mxu0 0.0
    %829 = vmatprep.subr.mxu0 0.0
    %830 = vmatpush1.msra.mxu0 0.0
    %831 = vmatprep.subr.mxu0 0.0
    %832 = vmatpush1.msra.mxu0 0.0
    %833 = vmatprep.subr.mxu0 0.0
    %834 = vmatpush1.msra.mxu0 0.0
    %835 = vmatprep.subr.mxu0 0.0
    %836 = vmatpush1.msra.mxu0 0.0
    %837 = vmatprep.mubr.f32.mxu0 0.0
    %838 = vmatmul.mubr.f32.gmra.mrb[0].mxu0 %v771
    %v839 = vpop.f32.mrb[0].mxu0
    %v840 = vadd.f32 %v769, %v839
    %v841 = vpop.f32.mrb[0].mxu0
    %842 = vdwg.mxu0
    %v843 = vxor.u32 %v840, 2147483648
    %v844 = vmul.f32 %v843, 1.442695
    %v845 = vpow.pop %v844
    %v846 = vadd.f32 %v845, 1.0
    %v847 = vrcp.pop %v846
    %v848 = vmul.f32 1.0, %v847
    %850 = vrot.lane.b32.xlu0 %v840, 32
    %v851 = vpop.permute.xlu0 %850
    %v853 = vmul.f32 %v848, %v851
    %855 = vrot.lane.b32.xlu0 %v853, 64
    %v856 = vpop.permute.xlu0 %855
    %v858 = vadd.f32 %v840, %v856
    %v859 = vtanh.pop %v858
    %v860 = vsub.f32 1.0, %v848
    %862 = vrot.lane.b32.xlu0 %v859, 96
    %v863 = vpop.permute.xlu0 %862
    %v865 = vmul.f32 %v860, %v863
    %v866 = vmul.f32 %v848, %v765
    %v867 = vadd.f32 %v865, %v866
    %869 = vrot.lane.b32.xlu0 %v867, 96
    %v870 = vpop.permute.xlu0 %869
    %v871 = vrot.slane %v244, 6
    %v873 = vsel %vm173, %v870, 0
    %875 = vmatprep.subr.mxu0 0.0
    %876 = vmatpush1.msra.mxu0 %v248
    %877 = vmatprep.subr.mxu0 0.0
    %878 = vmatpush1.msra.mxu0 %v249
    %879 = vmatprep.subr.mxu0 0.0
    %880 = vmatpush1.msra.mxu0 %v250
    %881 = vmatprep.subr.mxu0 0.0
    %882 = vmatpush1.msra.mxu0 %v251
    %883 = vmatprep.subr.mxu0 0.0
    %884 = vmatpush1.msra.mxu0 0.0
    %885 = vmatprep.subr.mxu0 0.0
    %886 = vmatpush1.msra.mxu0 0.0
    %887 = vmatprep.subr.mxu0 0.0
    %888 = vmatpush1.msra.mxu0 0.0
    %889 = vmatprep.subr.mxu0 0.0
    %890 = vmatpush1.msra.mxu0 0.0
    %891 = vmatprep.subr.mxu0 0.0
    %892 = vmatpush1.msra.mxu0 0.0
    %893 = vmatprep.subr.mxu0 0.0
    %894 = vmatpush1.msra.mxu0 0.0
    %895 = vmatprep.subr.mxu0 0.0
    %896 = vmatpush1.msra.mxu0 0.0
    %897 = vmatprep.subr.mxu0 0.0
    %898 = vmatpush1.msra.mxu0 0.0
    %899 = vmatprep.subr.mxu0 0.0
    %900 = vmatpush1.msra.mxu0 0.0
    %901 = vmatprep.subr.mxu0 0.0
    %902 = vmatpush1.msra.mxu0 0.0
    %903 = vmatprep.subr.mxu0 0.0
    %904 = vmatpush1.msra.mxu0 0.0
    %905 = vmatprep.subr.mxu0 0.0
    %906 = vmatpush1.msra.mxu0 0.0
    %907 = vmatprep.subr.mxu0 0.0
    %908 = vmatpush1.msra.mxu0 0.0
    %909 = vmatprep.subr.mxu0 0.0
    %910 = vmatpush1.msra.mxu0 0.0
    %911 = vmatprep.subr.mxu0 0.0
    %912 = vmatpush1.msra.mxu0 0.0
    %913 = vmatprep.subr.mxu0 0.0
    %914 = vmatpush1.msra.mxu0 0.0
    %915 = vmatprep.subr.mxu0 0.0
    %916 = vmatpush1.msra.mxu0 0.0
    %917 = vmatprep.subr.mxu0 0.0
    %918 = vmatpush1.msra.mxu0 0.0
    %919 = vmatprep.subr.mxu0 0.0
    %920 = vmatpush1.msra.mxu0 0.0
    %921 = vmatprep.subr.mxu0 0.0
    %922 = vmatpush1.msra.mxu0 0.0
    %923 = vmatprep.subr.mxu0 0.0
    %924 = vmatpush1.msra.mxu0 0.0
    %925 = vmatprep.subr.mxu0 0.0
    %926 = vmatpush1.msra.mxu0 0.0
    %927 = vmatprep.subr.mxu0 0.0
    %928 = vmatpush1.msra.mxu0 0.0
    %929 = vmatprep.subr.mxu0 0.0
    %930 = vmatpush1.msra.mxu0 0.0
    %931 = vmatprep.subr.mxu0 0.0
    %932 = vmatpush1.msra.mxu0 0.0
    %933 = vmatprep.subr.mxu0 0.0
    %934 = vmatpush1.msra.mxu0 0.0
    %935 = vmatprep.subr.mxu0 0.0
    %936 = vmatpush1.msra.mxu0 0.0
    %937 = vmatprep.subr.mxu0 0.0
    %938 = vmatpush1.msra.mxu0 0.0
    %939 = vmatprep.mubr.f32.mxu0 0.0
    %940 = vmatmul.mubr.f32.gmra.mrb[0].mxu0 %v873
    %v941 = vpop.f32.mrb[0].mxu0
    %v942 = vadd.f32 %v871, %v941
    %v943 = vpop.f32.mrb[0].mxu0
    %944 = vdwg.mxu0
    %v945 = vxor.u32 %v942, 2147483648
    %v946 = vmul.f32 %v945, 1.442695
    %v947 = vpow.pop %v946
    %v948 = vadd.f32 %v947, 1.0
    %v949 = vrcp.pop %v948
    %v950 = vmul.f32 1.0, %v949
    %952 = vrot.lane.b32.xlu0 %v942, 32
    %v953 = vpop.permute.xlu0 %952
    %v955 = vmul.f32 %v950, %v953
    %957 = vrot.lane.b32.xlu0 %v955, 64
    %v958 = vpop.permute.xlu0 %957
    %v960 = vadd.f32 %v942, %v958
    %v961 = vtanh.pop %v960
    %v962 = vsub.f32 1.0, %v950
    %964 = vrot.lane.b32.xlu0 %v961, 96
    %v965 = vpop.permute.xlu0 %964
    %v967 = vmul.f32 %v962, %v965
    %v968 = vmul.f32 %v950, %v867
    %v969 = vadd.f32 %v967, %v968
    %971 = vrot.lane.b32.xlu0 %v969, 96
    %v972 = vpop.permute.xlu0 %971
    %v973 = vrot.slane %v244, 7
    %v975 = vsel %vm173, %v972, 0
    %977 = vmatprep.subr.mxu0 0.0
    %978 = vmatpush1.msra.mxu0 %v248
    %979 = vmatprep.subr.mxu0 0.0
    %980 = vmatpush1.msra.mxu0 %v249
    %981 = vmatprep.subr.mxu0 0.0
    %982 = vmatpush1.msra.mxu0 %v250
    %983 = vmatprep.subr.mxu0 0.0
    %984 = vmatpush1.msra.mxu0 %v251
    %985 = vmatprep.subr.mxu0 0.0
    %986 = vmatpush1.msra.mxu0 0.0
    %987 = vmatprep.subr.mxu0 0.0
    %988 = vmatpush1.msra.mxu0 0.0
    %989 = vmatprep.subr.mxu0 0.0
    %990 = vmatpush1.msra.mxu0 0.0
    %991 = vmatprep.subr.mxu0 0.0
    %992 = vmatpush1.msra.mxu0 0.0
    %993 = vmatprep.subr.mxu0 0.0
    %994 = vmatpush1.msra.mxu0 0.0
    %995 = vmatprep.subr.mxu0 0.0
    %996 = vmatpush1.msra.mxu0 0.0
    %997 = vmatprep.subr.mxu0 0.0
    %998 = vmatpush1.msra.mxu0 0.0
    %999 = vmatprep.subr.mxu0 0.0
    %1000 = vmatpush1.msra.mxu0 0.0
    %1001 = vmatprep.subr.mxu0 0.0
    %1002 = vmatpush1.msra.mxu0 0.0
    %1003 = vmatprep.subr.mxu0 0.0
    %1004 = vmatpush1.msra.mxu0 0.0
    %1005 = vmatprep.subr.mxu0 0.0
    %1006 = vmatpush1.msra.mxu0 0.0
    %1007 = vmatprep.subr.mxu0 0.0
    %1008 = vmatpush1.msra.mxu0 0.0
    %1009 = vmatprep.subr.mxu0 0.0
    %1010 = vmatpush1.msra.mxu0 0.0
    %1011 = vmatprep.subr.mxu0 0.0
    %1012 = vmatpush1.msra.mxu0 0.0
    %1013 = vmatprep.subr.mxu0 0.0
    %1014 = vmatpush1.msra.mxu0 0.0
    %1015 = vmatprep.subr.mxu0 0.0
    %1016 = vmatpush1.msra.mxu0 0.0
    %1017 = vmatprep.subr.mxu0 0.0
    %1018 = vmatpush1.msra.mxu0 0.0
    %1019 = vmatprep.subr.mxu0 0.0
    %1020 = vmatpush1.msra.mxu0 0.0
    %1021 = vmatprep.subr.mxu0 0.0
    %1022 = vmatpush1.msra.mxu0 0.0
    %1023 = vmatprep.subr.mxu0 0.0
    %1024 = vmatpush1.msra.mxu0 0.0
    %1025 = vmatprep.subr.mxu0 0.0
    %1026 = vmatpush1.msra.mxu0 0.0
    %1027 = vmatprep.subr.mxu0 0.0
    %1028 = vmatpush1.msra.mxu0 0.0
    %1029 = vmatprep.subr.mxu0 0.0
    %1030 = vmatpush1.msra.mxu0 0.0
    %1031 = vmatprep.subr.mxu0 0.0
    %1032 = vmatpush1.msra.mxu0 0.0
    %1033 = vmatprep.subr.mxu0 0.0
    %1034 = vmatpush1.msra.mxu0 0.0
    %1035 = vmatprep.subr.mxu0 0.0
    %1036 = vmatpush1.msra.mxu0 0.0
    %1037 = vmatprep.subr.mxu0 0.0
    %1038 = vmatpush1.msra.mxu0 0.0
    %1039 = vmatprep.subr.mxu0 0.0
    %1040 = vmatpush1.msra.mxu0 0.0
    %1041 = vmatprep.mubr.f32.mxu0 0.0
    %1042 = vmatmul.mubr.f32.gmra.mrb[0].mxu0 %v975
    %v1043 = vpop.f32.mrb[0].mxu0
    %v1044 = vadd.f32 %v973, %v1043
    %v1045 = vpop.f32.mrb[0].mxu0
    %1046 = vdwg.mxu0
    %v1047 = vxor.u32 %v1044, 2147483648
    %v1048 = vmul.f32 %v1047, 1.442695
    %v1049 = vpow.pop %v1048
    %v1050 = vadd.f32 %v1049, 1.0
    %v1051 = vrcp.pop %v1050
    %v1052 = vmul.f32 1.0, %v1051
    %1054 = vrot.lane.b32.xlu0 %v1044, 32
    %v1055 = vpop.permute.xlu0 %1054
    %v1057 = vmul.f32 %v1052, %v1055
    %1059 = vrot.lane.b32.xlu0 %v1057, 64
    %v1060 = vpop.permute.xlu0 %1059
    %v1062 = vadd.f32 %v1044, %v1060
    %v1063 = vtanh.pop %v1062
    %v1064 = vsub.f32 1.0, %v1052
    %1066 = vrot.lane.b32.xlu0 %v1063, 96
    %v1067 = vpop.permute.xlu0 %1066
    %v1069 = vmul.f32 %v1064, %v1067
    %v1070 = vmul.f32 %v1052, %v969
    %v1071 = vadd.f32 %v1069, %v1070
    %v1072 = vrot.slane %v459, 7
    %v1074 = vrot.slane %v561, 6
    %v1076 = vrot.slane %v663, 5
    %v1078 = vrot.slane %v765, 4
    %v1080 = vrot.slane %v867, 3
    %v1082 = vrot.slane %v969, 2
    %v1085 = vrot.slane %v1071, 1
    %v1087 = vsel %vm148, %v356, %v1072
    %v1088 = vsel %vm150, %v1087, %v1074
    %v1089 = vsel %vm152, %v1088, %v1076
    %v1090 = vsel %vm154, %v1089, %v1078
    %v1091 = vsel %vm156, %v1090, %v1080
    %v1092 = vsel %vm158, %v1091, %v1082
    %v1093 = vsel %vm160, %v1092, %v1085
    %v1094 = vld [vmem:[#allocation9] sm:$0xff]
    %v1095 = vld [vmem:[#allocation9 + $0x8] sm:$0xff]
    %v1096 = vld [vmem:[#allocation9 + $0x10] sm:$0xff]
    %v1097 = vld [vmem:[#allocation9 + $0x18] sm:$0xff]
    %v1098 = vld [vmem:[%s7] sm:$0x1]
    %v1100 = vlaneseq
    %v1101 = vshrl.u32 %v1100, 7
    %v1102 = vsub.s32 0, %v1101
    %v1103 = vrot.slane %v1098, %v1102
    %1106 = vrot.lane.b32.xlu0 %v1093, 96
    %v1107 = vpop.permute.xlu0 %1106
    %v1108 = vsel %vm173, %v1107, 0
    %1110 = vmatprep.subr.mxu0 0.0
    %1111 = vmatpush1.msra.mxu0 %v1094
    %1112 = vmatprep.subr.mxu0 0.0
    %1113 = vmatpush1.msra.mxu0 %v1095
    %1114 = vmatprep.subr.mxu0 0.0
    %1115 = vmatpush1.msra.mxu0 %v1096
    %1116 = vmatprep.subr.mxu0 0.0
    %1117 = vmatpush1.msra.mxu0 %v1097
    %1118 = vmatprep.subr.mxu0 0.0
    %1119 = vmatpush1.msra.mxu0 0.0
    %1120 = vmatprep.subr.mxu0 0.0
    %1121 = vmatpush1.msra.mxu0 0.0
    %1122 = vmatprep.subr.mxu0 0.0
    %1123 = vmatpush1.msra.mxu0 0.0
    %1124 = vmatprep.subr.mxu0 0.0
    %1125 = vmatpush1.msra.mxu0 0.0
    %1126 = vmatprep.subr.mxu0 0.0
    %1127 = vmatpush1.msra.mxu0 0.0
    %1128 = vmatprep.subr.mxu0 0.0
    %1129 = vmatpush1.msra.mxu0 0.0
    %1130 = vmatprep.subr.mxu0 0.0
    %1131 = vmatpush1.msra.mxu0 0.0
    %1132 = vmatprep.subr.mxu0 0.0
    %1133 = vmatpush1.msra.mxu0 0.0
    %1134 = vmatprep.subr.mxu0 0.0
    %1135 = vmatpush1.msra.mxu0 0.0
    %1136 = vmatprep.subr.mxu0 0.0
    %1137 = vmatpush1.msra.mxu0 0.0
    %1138 = vmatprep.subr.mxu0 0.0
    %1139 = vmatpush1.msra.mxu0 0.0
    %1140 = vmatprep.subr.mxu0 0.0
    %1141 = vmatpush1.msra.mxu0 0.0
    %1142 = vmatprep.subr.mxu0 0.0
    %1143 = vmatpush1.msra.mxu0 0.0
    %1144 = vmatprep.subr.mxu0 0.0
    %1145 = vmatpush1.msra.mxu0 0.0
    %1146 = vmatprep.subr.mxu0 0.0
    %1147 = vmatpush1.msra.mxu0 0.0
    %1148 = vmatprep.subr.mxu0 0.0
    %1149 = vmatpush1.msra.mxu0 0.0
    %1150 = vmatprep.subr.mxu0 0.0
    %1151 = vmatpush1.msra.mxu0 0.0
    %1152 = vmatprep.subr.mxu0 0.0
    %1153 = vmatpush1.msra.mxu0 0.0
    %1154 = vmatprep.subr.mxu0 0.0
    %1155 = vmatpush1.msra.mxu0 0.0
    %1156 = vmatprep.subr.mxu0 0.0
    %1157 = vmatpush1.msra.mxu0 0.0
    %1158 = vmatprep.subr.mxu0 0.0
    %1159 = vmatpush1.msra.mxu0 0.0
    %1160 = vmatprep.subr.mxu0 0.0
    %1161 = vmatpush1.msra.mxu0 0.0
    %1162 = vmatprep.subr.mxu0 0.0
    %1163 = vmatpush1.msra.mxu0 0.0
    %1164 = vmatprep.subr.mxu0 0.0
    %1165 = vmatpush1.msra.mxu0 0.0
    %1166 = vmatprep.subr.mxu0 0.0
    %1167 = vmatpush1.msra.mxu0 0.0
    %1168 = vmatprep.subr.mxu0 0.0
    %1169 = vmatpush1.msra.mxu0 0.0
    %1170 = vmatprep.subr.mxu0 0.0
    %1171 = vmatpush1.msra.mxu0 0.0
    %1172 = vmatprep.subr.mxu0 0.0
    %1173 = vmatpush1.msra.mxu0 0.0
    %1174 = vmatprep.mubr.f32.mxu0 0.0
    %1175 = vmatmul.mubr.f32.gmra.mrb[0].mxu0 %v1108
    %v1176 = vpop.f32.mrb[0].mxu0
    %v1177 = vadd.f32 %v1103, %v1176
    %v1178 = vpop.f32.mrb[0].mxu0
    %1179 = vdwg.mxu0
    %1180 = vmax.xlane.f32.xlu0 %v1177
    %v1181 = vpop.xlane.xlu0 %1180
    %v1182 = vsub.f32 %v1177, %v1181
    %v1183 = vmul.f32 %v1182, 1.442695
    %v1184 = vpow.pop %v1183
    %1185 = vadd.xlane.f32.xlu0 %v1184
    %v1186 = vpop.xlane.xlu0 %1185
    %v1187 = vlog2.pop %v1186
    %v1188 = vmul.f32 %v1187, 0.6931472
    %v1189 = vadd.f32 %v1188, %v1181
    %v1190 = vsub.f32 %v1177, %v1189
    %1191 = vst [vmem:[%s8] sm:$0xff] %v1190
    // Predicated region
    $region54: #{run.1} parent=1 // pred_check
      _
    $region55: #{run.1} parent=1 // pred_check_branch
      %1193 = sbr.rel (0) target = $region57
    $region56: #{run.1} parent=1 // pred_region
      _
    $region57: #{run.1} parent=1 // pred_fallthru
      _
    // Predicated region
    $region58: #{run.1} parent=1 // pred_check
      _
    $region59: #{run.1} parent=1 // pred_check_branch
      %1195 = sbr.rel (0) target = $region61
    $region60: #{run.1} parent=1 // pred_region
      _
    $region61: #{run.1} parent=1 // pred_fallthru
      _
    %1196 = vsyncpa [#allocation3], 1
    %1197 = vsyncpa [#allocation7], 1
    %1198 = vsyncpa [#allocation10], 1
    %1199 = vsyncpa [#allocation4], 1

</llo_original>
